<compile_context>
chip_gen: v6e
topology: v6e:2x2x1
jax: 0.10.0
libtpu: 0.0.40
codegen_flags: <defaults>
</compile_context>

<pallas_src>
import functools
import math

import jax
import jax.numpy as jnp
from jax.experimental import pallas as pl
from jax.experimental.pallas import tpu as pltpu

CACHE_NUM = 64  # hardcoded `cache_num = 64` in SelectiveAttention.forward


# --------------------------- in-kernel helpers -------------------------------

def _layernorm(x, g, b, eps):
    mean = jnp.mean(x, axis=-1, keepdims=True)
    var = jnp.mean(jnp.square(x - mean), axis=-1, keepdims=True)  # biased, like torch
    return (x - mean) * jax.lax.rsqrt(var + eps) * g + b


def _gelu(x):
    # CustomGELU: x * 0.5 * (1 + erf(x / 1.41421)); erf runs on the EUP.
    return x * 0.5 * (1.0 + jax.lax.erf(x / 1.41421))


# ------------------------------ Pallas kernels --------------------------------

def _attn_front_kernel(x_ref, qc_ref, kc_ref, vc_ref,
                       ln1g_ref, ln1b_ref, wqkv_ref, bqkv_ref,
                       o_ref, q_scr, k_scr, v_scr, *, n_live, hd, eps):
    """ln_1 -> live-head QKV matmul -> in-VMEM cache concat -> full attention.

    Only the `n_live` heads whose outputs survive the torch
    transpose(1,2).view(-1,E)[cache_num:] row-scramble are computed (dead-head
    elimination); wqkv/bqkv and q_c/k_c/v_c are already column-sliced to those
    heads by the wrapper.  Output: [Ttot, n_live*hd], live head h' occupying
    columns [h'*hd:(h'+1)*hd] in natural (token, head_dim) layout.
    """
    x = x_ref[...]
    T = x.shape[0]
    C = qc_ref.shape[0]
    W = n_live * hd
    scale = 1.0 / math.sqrt(hd)

    xn = _layernorm(x, ln1g_ref[...], ln1b_ref[...], eps)
    qkv = jnp.dot(xn, wqkv_ref[...],
                  preferred_element_type=jnp.float32) + bqkv_ref[...]      # [T, 3W]

    # SelectiveAttention cache concat, written in place into VMEM scratch
    # (no sublane-concat relayout, no extra value copies).
    q_scr[0:C, :] = qc_ref[...]
    k_scr[0:C, :] = kc_ref[...]
    v_scr[0:C, :] = vc_ref[...]
    q_scr[C:C + T, :] = qkv[:, 0:W]
    k_scr[C:C + T, :] = qkv[:, W:2 * W]
    v_scr[C:C + T, :] = qkv[:, 2 * W:3 * W]

    for h in range(n_live):                 # static unroll over live heads only
        cols = slice(h * hd, (h + 1) * hd)
        q_h = q_scr[:, cols]
        k_h = k_scr[:, cols]
        v_h = v_scr[:, cols]
        # q @ k^T without an explicit transpose: contract the last dims.
        s = jax.lax.dot_general(q_h, k_h, (((1,), (1,)), ((), ())),
                                preferred_element_type=jnp.float32) * scale
        s = s - jnp.max(s, axis=-1, keepdims=True)  # stable softmax (NO mask, as in torch)
        p = jnp.exp(s)
        p = p / jnp.sum(p, axis=-1, keepdims=True)  # exact denominator (torch parity)
        # write this head's output straight into its output columns
        o_ref[:, cols] = jnp.dot(p, v_h,
                                 preferred_element_type=jnp.float32).astype(o_ref.dtype)


def _block_tail_kernel(x_ref, y_ref, wproj_ref, bproj_ref,
                       ln2g_ref, ln2b_ref, wfc_ref, bfc_ref, wfc2_ref, bfc2_ref,
                       o_ref, *, eps):
    """c_proj + residual + ln_2 + MLP(Linear -> CustomGELU -> Linear) + residual."""
    x = x_ref[...]
    y = jnp.dot(y_ref[...], wproj_ref[...],
                preferred_element_type=jnp.float32) + bproj_ref[...]
    x = x + y                                                      # attention residual
    xn = _layernorm(x, ln2g_ref[...], ln2b_ref[...], eps)
    h = _gelu(jnp.dot(xn, wfc_ref[...],
                      preferred_element_type=jnp.float32) + bfc_ref[...])
    h = jnp.dot(h, wfc2_ref[...],
                preferred_element_type=jnp.float32) + bfc2_ref[...]
    o_ref[...] = (x + h).astype(o_ref.dtype)                       # MLP residual


def _head_kernel(x_ref, lng_ref, lnb_ref, w_ref, o_ref, *, eps):
    """Final LayerNorm + LM head matmul (no bias) for the last token only."""
    xn = _layernorm(x_ref[...], lng_ref[...], lnb_ref[...], eps)
    o_ref[...] = jnp.dot(xn, w_ref[...],
                         preferred_element_type=jnp.float32).astype(o_ref.dtype)


# ------------------------------ kernel wrappers -------------------------------

def attn_front(x, q_c, k_c, v_c, ln1_g, ln1_b, wqkv, bqkv, *, n_live, hd, eps):
    T = x.shape[0]
    C = q_c.shape[0]
    Ttot = C + T
    W = n_live * hd
    return pl.pallas_call(
        functools.partial(_attn_front_kernel, n_live=n_live, hd=hd, eps=eps),
        out_shape=jax.ShapeDtypeStruct((Ttot, W), jnp.float32),
        scratch_shapes=[
            pltpu.VMEM((Ttot, W), jnp.float32),   # q (cache ++ new)
            pltpu.VMEM((Ttot, W), jnp.float32),   # k
            pltpu.VMEM((Ttot, W), jnp.float32),   # v
        ],
    )(x, q_c, k_c, v_c, ln1_g, ln1_b, wqkv, bqkv)


def block_tail(x, y_sel, blk, *, eps):
    R, E = x.shape
    return pl.pallas_call(
        functools.partial(_block_tail_kernel, eps=eps),
        out_shape=jax.ShapeDtypeStruct((R, E), x.dtype),
    )(x, y_sel, blk["proj_w"], blk["proj_b"], blk["ln2_g"], blk["ln2_b"],
      blk["fc_w"], blk["fc_b"], blk["fc2_w"], blk["fc2_b"])


def head_logits(x_last, ln_g, ln_b, head_w, *, eps):
    V = head_w.shape[1]
    # TODO(synk): at V=50257 tile the vocab into 128-multiple lane chunks with a
    # grid + "parallel" semantics; a single (E, V) f32 block does not fit VMEM.
    return pl.pallas_call(
        functools.partial(_head_kernel, eps=eps),
        out_shape=jax.ShapeDtypeStruct((1, V), x_last.dtype),
    )(x_last, ln_g, ln_b, head_w)


# ------------------------------- model glue -----------------------------------

def block_forward(x, blk, q_c, k_c, v_c, *, n_head, eps, rows_out):
    """One transformer block.  `rows_out` = how many (trailing) output rows the
    caller actually consumes (T for inner blocks, 1 for the last block)."""
    T, E = x.shape
    hd = E // n_head
    Ttot = CACHE_NUM + T

    # Dead-head elimination (static): torch's view(-1,E)[row_start:] only reads
    # flat elements >= row_start*E, i.e. heads h >= (row_start*E)//(hd*Ttot).
    row_start = Ttot - rows_out
    h_start = (row_start * E) // (hd * Ttot)
    n_live = n_head - h_start
    c0 = h_start * hd

    # Slice the live Q/K/V columns of c_attn and of the in-sentence cache
    # (tiny XLA slices; avoids DMA-ing and multiplying dead columns).
    aw, ab = blk["attn_w"], blk["attn_b"]
    wqkv = jnp.concatenate(
        [aw[:, c0:E], aw[:, E + c0:2 * E], aw[:, 2 * E + c0:3 * E]], axis=1)
    bqkv = jnp.concatenate(
        [ab[:, c0:E], ab[:, E + c0:2 * E], ab[:, 2 * E + c0:3 * E]], axis=1)

    # fused: ln_1 + live-head QKV + in-VMEM cache concat + attention
    y = attn_front(x, q_c[:, c0:], k_c[:, c0:], v_c[:, c0:],
                   blk["ln1_g"], blk["ln1_b"], wqkv, bqkv,
                   n_live=n_live, hd=hd, eps=eps)                  # [Ttot, n_live*hd]

    # torch: y.transpose(1, 2).contiguous().view(-1, n_embd)[cache_num:, :],
    # restricted to the live heads and the consumed rows.  Tiny XLA relayout.
    # TODO(synk): fold this row-scramble into the attention kernel once Mosaic
    # reliably lowers these non-(8,128)-aligned reshapes/transposes.
    flat = y.reshape(Ttot, n_live, hd).transpose(1, 2, 0).reshape(-1)
    off = row_start * E - h_start * hd * Ttot
    y_sel = flat[off:].reshape(rows_out, E)

    # fused: c_proj + residual + ln_2 + MLP(GELU) + residual on consumed rows only
    return block_tail(x[T - rows_out:, :], y_sel, blk, eps=eps)


def gpt_forward(params, idx, pos, q_c, k_c, v_c, *, n_head, eps, return_logits=False):
    # embedding gathers = XLA glue
    x = params["token_emb"][idx] + params["pos_emb"][pos]           # [T, E]
    n_layer = len(params["blocks"])
    for li, blk in enumerate(params["blocks"]):
        # Only x[-1] feeds the head, so the last block's tail runs on 1 row.
        rows_out = 1 if li == n_layer - 1 else x.shape[0]
        x = block_forward(x, blk, q_c, k_c, v_c,
                          n_head=n_head, eps=eps, rows_out=rows_out)

    # LayerNorm + head are row-wise -> computing only the last row is identical.
    logits = head_logits(x[-1:, :], params["ln_g"], params["ln_b"],
                         params["head_w"], eps=eps)                 # [1, V]
    V = logits.shape[1]
    new_token = logits.reshape(-1, V)                               # torch: .view(-1, 50257)
    probs = jax.nn.softmax(new_token, axis=1)
    new_token_idx = jnp.argmax(probs, axis=1)
    out = new_token_idx.reshape(-1, 1)
    if return_logits:
        return out, new_token
    return out


# ------------------------------ pure-JAX reference ----------------------------

def _ref_forward(params, idx, pos, q_c, k_c, v_c, *, n_head, eps):
    """Straightforward jnp transcription of the torch module (correctness check)."""
    def ln(x, g, b):
        m = jnp.mean(x, axis=-1, keepdims=True)
        v_ = jnp.mean(jnp.square(x - m), axis=-1, keepdims=True)
        return (x - m) * jax.lax.rsqrt(v_ + eps) * g + b

    x = params["token_emb"][idx] + params["pos_emb"][pos]
    T, E = x.shape
    hd = E // n_head
    for blk in params["blocks"]:
        xn = ln(x, blk["ln1_g"], blk["ln1_b"])
        qkv = xn @ blk["attn_w"] + blk["attn_b"]
        q = jnp.concatenate([q_c, qkv[:, :E]], axis=0)
        k = jnp.concatenate([k_c, qkv[:, E:2 * E]], axis=0)
        v = jnp.concatenate([v_c, qkv[:, 2 * E:]], axis=0)
        Ttot = q.shape[0]
        qh = q.reshape(Ttot, n_head, hd).transpose(1, 0, 2)
        kh = k.reshape(Ttot, n_head, hd).transpose(1, 0, 2)
        vh = v.reshape(Ttot, n_head, hd).transpose(1, 0, 2)
        s = jnp.einsum("hid,hjd->hij", qh, kh) * (1.0 / math.sqrt(hd))
        p = jax.nn.softmax(s, axis=-1)
        y = jnp.einsum("hij,hjd->hid", p, vh)
        y = jnp.transpose(y, (0, 2, 1)).reshape(-1, E)[CACHE_NUM:, :]
        x = x + (y @ blk["proj_w"] + blk["proj_b"])
        xn2 = ln(x, blk["ln2_g"], blk["ln2_b"])
        h = xn2 @ blk["fc_w"] + blk["fc_b"]
        h = h * 0.5 * (1.0 + jax.lax.erf(h / 1.41421))
        x = x + (h @ blk["fc2_w"] + blk["fc2_b"])
    x = ln(x, params["ln_g"], params["ln_b"])
    logits = x @ params["head_w"]
    new_token = logits[-1].reshape(-1, logits.shape[1])
    probs = jax.nn.softmax(new_token, axis=1)
    return jnp.argmax(probs, axis=1).reshape(-1, 1), new_token


# ------------------------------- params init ----------------------------------

def init_params(key, *, vocab_size, n_layer, n_embd, n_positions):
    # TODO(synk): at production sizes store the linear weights in bf16 (f32
    # accumulation stays in-kernel) to halve HBM traffic / VMEM footprint.
    def normal(k, shape, scale=0.02):
        return (scale * jax.random.normal(k, shape)).astype(jnp.float32)

    keys = jax.random.split(key, 4 + n_layer)
    params = {
        "token_emb": normal(keys[0], (vocab_size, n_embd), 1.0),
        "pos_emb": normal(keys[1], (n_positions, n_embd), 1.0),
        "ln_g": jnp.ones((1, n_embd), jnp.float32),
        "ln_b": jnp.zeros((1, n_embd), jnp.float32),
        "head_w": normal(keys[2], (n_embd, vocab_size)),   # head: no bias
        "blocks": [],
    }
    for i in range(n_layer):
        ks = jax.random.split(keys[4 + i], 4)
        blk = {
            "ln1_g": jnp.ones((1, n_embd), jnp.float32),
            "ln1_b": jnp.zeros((1, n_embd), jnp.float32),
            "ln2_g": jnp.ones((1, n_embd), jnp.float32),
            "ln2_b": jnp.zeros((1, n_embd), jnp.float32),
            # c_attn / c_proj biases filled with 0.1 like the torch init_normal
            "attn_w": normal(ks[0], (n_embd, 3 * n_embd)),
            "attn_b": jnp.full((1, 3 * n_embd), 0.1, jnp.float32),
            "proj_w": normal(ks[1], (n_embd, n_embd)),
            "proj_b": jnp.full((1, n_embd), 0.1, jnp.float32),
            "fc_w": normal(ks[2], (n_embd, 4 * n_embd)),
            "fc_b": jnp.zeros((1, 4 * n_embd), jnp.float32),
            "fc2_w": normal(ks[3], (4 * n_embd, n_embd)),
            "fc2_b": jnp.zeros((1, n_embd), jnp.float32),
        }
        params["blocks"].append(blk)
    return params


# ----------------------------------- main --------------------------------------

if __name__ == "__main__":
    vocab_size = 512     # small synthetic vocab (stands in for 50257)
    n_layer = 2
    n_embd = 32
    n_head = 4
    n_positions = 128
    eps = 1e-5
    T = 8                # new tokens this step; cache adds 64 rows -> Ttot = 72

    key = jax.random.PRNGKey(0)
    kp, ki, kq, kk, kv = jax.random.split(key, 5)

    params = init_params(kp, vocab_size=vocab_size, n_layer=n_layer,
                         n_embd=n_embd, n_positions=n_positions)

    idx = jax.random.randint(ki, (T,), 0, vocab_size, dtype=jnp.int32)
    pos = jnp.arange(T, dtype=jnp.int32)
    q_c = jax.random.normal(kq, (CACHE_NUM, n_embd), jnp.float32)
    k_c = jax.random.normal(kk, (CACHE_NUM, n_embd), jnp.float32)
    v_c = jax.random.normal(kv, (CACHE_NUM, n_embd), jnp.float32)

    fwd = jax.jit(functools.partial(gpt_forward, n_head=n_head, eps=eps,
                                    return_logits=True))
    out, logits = fwd(params, idx, pos, q_c, k_c, v_c)
    jax.block_until_ready((out, logits))
    assert out.shape == (1, 1)

    # Correctness: compare last-token logits against a plain-XLA transcription of
    # the torch module (tolerance covers MXU default-precision differences), and
    # check the selected token is numerically as good as the reference's best.
    ref_out, ref_logits = jax.jit(
        functools.partial(_ref_forward, n_head=n_head, eps=eps))(
            params, idx, pos, q_c, k_c, v_c)
    jax.block_until_ready((ref_out, ref_logits))

    max_err = float(jnp.max(jnp.abs(logits - ref_logits)))
    assert bool(jnp.allclose(logits, ref_logits, rtol=2e-2, atol=2e-2)), max_err
    assert float(ref_logits[0, out[0, 0]]) >= float(ref_logits.max()) - 5e-2, (
        out, ref_out)

    print("KERNEL_OK")
</pallas_src>

<mosaic_0001>
module attributes {stable_mosaic.version = 11 : i64} {
  func.func @_attn_front_kernel(%arg0: memref<8x32xf32, #tpu.memory_space<vmem>>, %arg1: memref<64x8xf32, #tpu.memory_space<vmem>>, %arg2: memref<64x8xf32, #tpu.memory_space<vmem>>, %arg3: memref<64x8xf32, #tpu.memory_space<vmem>>, %arg4: memref<1x32xf32, #tpu.memory_space<vmem>>, %arg5: memref<1x32xf32, #tpu.memory_space<vmem>>, %arg6: memref<32x24xf32, #tpu.memory_space<vmem>>, %arg7: memref<1x24xf32, #tpu.memory_space<vmem>>, %arg8: memref<72x8xf32, #tpu.memory_space<vmem>>, %arg9: memref<72x8xf32, #tpu.memory_space<vmem>>, %arg10: memref<72x8xf32, #tpu.memory_space<vmem>>, %arg11: memref<72x8xf32, #tpu.memory_space<vmem>>) attributes {dimension_semantics = [], scalar_prefetch = 0 : i64, scratch_operands = 3 : i64, tpu.core_type = #tpu.core_type<tc>} {
    %c0 = arith.constant 0 : index
    %c0_0 = arith.constant 0 : index
    %0 = vector.load %arg0[%c0, %c0_0] : memref<8x32xf32, #tpu.memory_space<vmem>>, vector<8x32xf32>
    %c0_1 = arith.constant 0 : index
    %c0_2 = arith.constant 0 : index
    %1 = vector.load %arg4[%c0_1, %c0_2] : memref<1x32xf32, #tpu.memory_space<vmem>>, vector<1x32xf32>
    %c0_3 = arith.constant 0 : index
    %c0_4 = arith.constant 0 : index
    %2 = vector.load %arg5[%c0_3, %c0_4] : memref<1x32xf32, #tpu.memory_space<vmem>>, vector<1x32xf32>
    %cst = arith.constant dense<0.000000e+00> : vector<8xf32>
    %3 = vector.multi_reduction <add>, %0, %cst [1] : vector<8x32xf32> to vector<8xf32>
    %4 = vector.shape_cast %3 : vector<8xf32> to vector<8x1xf32>
    %cst_5 = arith.constant 3.200000e+01 : f32
    %5 = vector.broadcast %cst_5 : f32 to vector<8x1xf32>
    %6 = arith.divf %4, %5 : vector<8x1xf32>
    %7 = vector.broadcast %6 : vector<8x1xf32> to vector<8x32xf32>
    %8 = arith.subf %0, %7 : vector<8x32xf32>
    %9 = arith.mulf %8, %8 : vector<8x32xf32>
    %cst_6 = arith.constant dense<0.000000e+00> : vector<8xf32>
    %10 = vector.multi_reduction <add>, %9, %cst_6 [1] : vector<8x32xf32> to vector<8xf32>
    %11 = vector.shape_cast %10 : vector<8xf32> to vector<8x1xf32>
    %cst_7 = arith.constant 3.200000e+01 : f32
    %12 = vector.broadcast %cst_7 : f32 to vector<8x1xf32>
    %13 = arith.divf %11, %12 : vector<8x1xf32>
    %14 = vector.broadcast %6 : vector<8x1xf32> to vector<8x32xf32>
    %15 = arith.subf %0, %14 : vector<8x32xf32>
    %cst_8 = arith.constant 9.99999974E-6 : f32
    %16 = vector.broadcast %cst_8 : f32 to vector<8x1xf32>
    %17 = arith.addf %13, %16 : vector<8x1xf32>
    %18 = math.rsqrt %17 : vector<8x1xf32>
    %19 = vector.broadcast %18 : vector<8x1xf32> to vector<8x32xf32>
    %20 = arith.mulf %15, %19 : vector<8x32xf32>
    %21 = vector.broadcast %1 : vector<1x32xf32> to vector<8x32xf32>
    %22 = arith.mulf %20, %21 : vector<8x32xf32>
    %23 = vector.broadcast %2 : vector<1x32xf32> to vector<8x32xf32>
    %24 = arith.addf %22, %23 : vector<8x32xf32>
    %c0_9 = arith.constant 0 : index
    %c0_10 = arith.constant 0 : index
    %25 = vector.load %arg6[%c0_9, %c0_10] : memref<32x24xf32, #tpu.memory_space<vmem>>, vector<32x24xf32>
    %cst_11 = arith.constant dense<0.000000e+00> : vector<8x24xf32>
    %26 = tpu.matmul %24, %25, %cst_11 {dimension_numbers = #tpu.dot_dimension_numbers<[1], [0], [0], [1], [0, 0, 1, 1], [], []>} : vector<8x32xf32>, vector<32x24xf32>, vector<8x24xf32> -> vector<8x24xf32>
    %c0_12 = arith.constant 0 : index
    %c0_13 = arith.constant 0 : index
    %27 = vector.load %arg7[%c0_12, %c0_13] : memref<1x24xf32, #tpu.memory_space<vmem>>, vector<1x24xf32>
    %28 = vector.broadcast %27 : vector<1x24xf32> to vector<8x24xf32>
    %29 = arith.addf %26, %28 : vector<8x24xf32>
    %c0_14 = arith.constant 0 : index
    %c0_15 = arith.constant 0 : index
    %30 = vector.load %arg1[%c0_14, %c0_15] : memref<64x8xf32, #tpu.memory_space<vmem>>, vector<64x8xf32>
    %c0_16 = arith.constant 0 : index
    %c0_17 = arith.constant 0 : index
    %31 = vector.load %arg9[%c0_16, %c0_17] : memref<72x8xf32, #tpu.memory_space<vmem>>, vector<64x8xf32>
    tpu.vector_store %arg9[%c0_16, %c0_17], %30 {strides = array<i32>} : memref<72x8xf32, #tpu.memory_space<vmem>>, vector<64x8xf32>,
    %c0_18 = arith.constant 0 : index
    %c0_19 = arith.constant 0 : index
    %32 = vector.load %arg2[%c0_18, %c0_19] : memref<64x8xf32, #tpu.memory_space<vmem>>, vector<64x8xf32>
    %c0_20 = arith.constant 0 : index
    %c0_21 = arith.constant 0 : index
    %33 = vector.load %arg10[%c0_20, %c0_21] : memref<72x8xf32, #tpu.memory_space<vmem>>, vector<64x8xf32>
    tpu.vector_store %arg10[%c0_20, %c0_21], %32 {strides = array<i32>} : memref<72x8xf32, #tpu.memory_space<vmem>>, vector<64x8xf32>,
    %c0_22 = arith.constant 0 : index
    %c0_23 = arith.constant 0 : index
    %34 = vector.load %arg3[%c0_22, %c0_23] : memref<64x8xf32, #tpu.memory_space<vmem>>, vector<64x8xf32>
    %c0_24 = arith.constant 0 : index
    %c0_25 = arith.constant 0 : index
    %35 = vector.load %arg11[%c0_24, %c0_25] : memref<72x8xf32, #tpu.memory_space<vmem>>, vector<64x8xf32>
    tpu.vector_store %arg11[%c0_24, %c0_25], %34 {strides = array<i32>} : memref<72x8xf32, #tpu.memory_space<vmem>>, vector<64x8xf32>,
    %36 = vector.extract_strided_slice %29 {offsets = [0, 0], sizes = [8, 8], strides = [1, 1]} : vector<8x24xf32> to vector<8x8xf32>
    %c64 = arith.constant 64 : index
    %c0_26 = arith.constant 0 : index
    %37 = vector.load %arg9[%c64, %c0_26] : memref<72x8xf32, #tpu.memory_space<vmem>>, vector<8x8xf32>
    tpu.vector_store %arg9[%c64, %c0_26], %36 {strides = array<i32>} : memref<72x8xf32, #tpu.memory_space<vmem>>, vector<8x8xf32>,
    %38 = vector.extract_strided_slice %29 {offsets = [0, 8], sizes = [8, 8], strides = [1, 1]} : vector<8x24xf32> to vector<8x8xf32>
    %c64_27 = arith.constant 64 : index
    %c0_28 = arith.constant 0 : index
    %39 = vector.load %arg10[%c64_27, %c0_28] : memref<72x8xf32, #tpu.memory_space<vmem>>, vector<8x8xf32>
    tpu.vector_store %arg10[%c64_27, %c0_28], %38 {strides = array<i32>} : memref<72x8xf32, #tpu.memory_space<vmem>>, vector<8x8xf32>,
    %40 = vector.extract_strided_slice %29 {offsets = [0, 16], sizes = [8, 8], strides = [1, 1]} : vector<8x24xf32> to vector<8x8xf32>
    %c64_29 = arith.constant 64 : index
    %c0_30 = arith.constant 0 : index
    %41 = vector.load %arg11[%c64_29, %c0_30] : memref<72x8xf32, #tpu.memory_space<vmem>>, vector<8x8xf32>
    tpu.vector_store %arg11[%c64_29, %c0_30], %40 {strides = array<i32>} : memref<72x8xf32, #tpu.memory_space<vmem>>, vector<8x8xf32>,
    %c0_31 = arith.constant 0 : index
    %c0_32 = arith.constant 0 : index
    %42 = vector.load %arg9[%c0_31, %c0_32] : memref<72x8xf32, #tpu.memory_space<vmem>>, vector<72x8xf32>
    %c0_33 = arith.constant 0 : index
    %c0_34 = arith.constant 0 : index
    %43 = vector.load %arg10[%c0_33, %c0_34] : memref<72x8xf32, #tpu.memory_space<vmem>>, vector<72x8xf32>
    %c0_35 = arith.constant 0 : index
    %c0_36 = arith.constant 0 : index
    %44 = vector.load %arg11[%c0_35, %c0_36] : memref<72x8xf32, #tpu.memory_space<vmem>>, vector<72x8xf32>
    %cst_37 = arith.constant dense<0.000000e+00> : vector<72x72xf32>
    %45 = tpu.matmul %42, %43, %cst_37 {dimension_numbers = #tpu.dot_dimension_numbers<[1], [1], [0], [0], [0, 0, 1, 0], [], []>} : vector<72x8xf32>, vector<72x8xf32>, vector<72x72xf32> -> vector<72x72xf32>
    %cst_38 = arith.constant 0.353553385 : f32
    %46 = vector.broadcast %cst_38 : f32 to vector<72x72xf32>
    %47 = arith.mulf %45, %46 : vector<72x72xf32>
    %cst_39 = arith.constant dense<0xFF800000> : vector<72xf32>
    %48 = vector.multi_reduction <maximumf>, %47, %cst_39 [1] : vector<72x72xf32> to vector<72xf32>
    %49 = vector.shape_cast %48 : vector<72xf32> to vector<72x1xf32>
    %50 = vector.broadcast %49 : vector<72x1xf32> to vector<72x72xf32>
    %51 = arith.subf %47, %50 : vector<72x72xf32>
    %52 = math.exp %51 : vector<72x72xf32>
    %cst_40 = arith.constant dense<0.000000e+00> : vector<72xf32>
    %53 = vector.multi_reduction <add>, %52, %cst_40 [1] : vector<72x72xf32> to vector<72xf32>
    %54 = vector.shape_cast %53 : vector<72xf32> to vector<72x1xf32>
    %55 = vector.broadcast %54 : vector<72x1xf32> to vector<72x72xf32>
    %56 = arith.divf %52, %55 : vector<72x72xf32>
    %cst_41 = arith.constant dense<0.000000e+00> : vector<72x8xf32>
    %57 = tpu.matmul %56, %44, %cst_41 {dimension_numbers = #tpu.dot_dimension_numbers<[1], [0], [0], [1], [0, 0, 1, 1], [], []>} : vector<72x72xf32>, vector<72x8xf32>, vector<72x8xf32> -> vector<72x8xf32>
    %c0_42 = arith.constant 0 : index
    %c0_43 = arith.constant 0 : index
    %58 = vector.load %arg8[%c0_42, %c0_43] : memref<72x8xf32, #tpu.memory_space<vmem>>, vector<72x8xf32>
    tpu.vector_store %arg8[%c0_42, %c0_43], %57 {strides = array<i32>} : memref<72x8xf32, #tpu.memory_space<vmem>>, vector<72x8xf32>,
    return
  }
}

module attributes {stable_mosaic.version = 11 : i64} {
  func.func @_block_tail_kernel(%arg0: memref<1x32xf32, #tpu.memory_space<vmem>>, %arg1: memref<1x32xf32, #tpu.memory_space<vmem>>, %arg2: memref<32x32xf32, #tpu.memory_space<vmem>>, %arg3: memref<1x32xf32, #tpu.memory_space<vmem>>, %arg4: memref<1x32xf32, #tpu.memory_space<vmem>>, %arg5: memref<1x32xf32, #tpu.memory_space<vmem>>, %arg6: memref<32x128xf32, #tpu.memory_space<vmem>>, %arg7: memref<1x128xf32, #tpu.memory_space<vmem>>, %arg8: memref<128x32xf32, #tpu.memory_space<vmem>>, %arg9: memref<1x32xf32, #tpu.memory_space<vmem>>, %arg10: memref<1x32xf32, #tpu.memory_space<vmem>>) attributes {dimension_semantics = [], scalar_prefetch = 0 : i64, scratch_operands = 0 : i64, tpu.core_type = #tpu.core_type<tc>} {
    %c0 = arith.constant 0 : index
    %c0_0 = arith.constant 0 : index
    %0 = vector.load %arg0[%c0, %c0_0] : memref<1x32xf32, #tpu.memory_space<vmem>>, vector<1x32xf32>
    %c0_1 = arith.constant 0 : index
    %c0_2 = arith.constant 0 : index
    %1 = vector.load %arg1[%c0_1, %c0_2] : memref<1x32xf32, #tpu.memory_space<vmem>>, vector<1x32xf32>
    %c0_3 = arith.constant 0 : index
    %c0_4 = arith.constant 0 : index
    %2 = vector.load %arg2[%c0_3, %c0_4] : memref<32x32xf32, #tpu.memory_space<vmem>>, vector<32x32xf32>
    %cst = arith.constant dense<0.000000e+00> : vector<1x32xf32>
    %3 = tpu.matmul %1, %2, %cst {dimension_numbers = #tpu.dot_dimension_numbers<[1], [0], [0], [1], [0, 0, 1, 1], [], []>} : vector<1x32xf32>, vector<32x32xf32>, vector<1x32xf32> -> vector<1x32xf32>
    %c0_5 = arith.constant 0 : index
    %c0_6 = arith.constant 0 : index
    %4 = vector.load %arg3[%c0_5, %c0_6] : memref<1x32xf32, #tpu.memory_space<vmem>>, vector<1x32xf32>
    %5 = arith.addf %3, %4 : vector<1x32xf32>
    %6 = arith.addf %0, %5 : vector<1x32xf32>
    %c0_7 = arith.constant 0 : index
    %c0_8 = arith.constant 0 : index
    %7 = vector.load %arg4[%c0_7, %c0_8] : memref<1x32xf32, #tpu.memory_space<vmem>>, vector<1x32xf32>
    %c0_9 = arith.constant 0 : index
    %c0_10 = arith.constant 0 : index
    %8 = vector.load %arg5[%c0_9, %c0_10] : memref<1x32xf32, #tpu.memory_space<vmem>>, vector<1x32xf32>
    %cst_11 = arith.constant dense<0.000000e+00> : vector<1xf32>
    %9 = vector.multi_reduction <add>, %6, %cst_11 [1] : vector<1x32xf32> to vector<1xf32>
    %10 = vector.shape_cast %9 : vector<1xf32> to vector<1x1xf32>
    %cst_12 = arith.constant 3.200000e+01 : f32
    %11 = vector.broadcast %cst_12 : f32 to vector<1x1xf32>
    %12 = arith.divf %10, %11 : vector<1x1xf32>
    %13 = vector.broadcast %12 : vector<1x1xf32> to vector<1x32xf32>
    %14 = arith.subf %6, %13 : vector<1x32xf32>
    %15 = arith.mulf %14, %14 : vector<1x32xf32>
    %cst_13 = arith.constant dense<0.000000e+00> : vector<1xf32>
    %16 = vector.multi_reduction <add>, %15, %cst_13 [1] : vector<1x32xf32> to vector<1xf32>
    %17 = vector.shape_cast %16 : vector<1xf32> to vector<1x1xf32>
    %cst_14 = arith.constant 3.200000e+01 : f32
    %18 = vector.broadcast %cst_14 : f32 to vector<1x1xf32>
    %19 = arith.divf %17, %18 : vector<1x1xf32>
    %20 = vector.broadcast %12 : vector<1x1xf32> to vector<1x32xf32>
    %21 = arith.subf %6, %20 : vector<1x32xf32>
    %cst_15 = arith.constant 9.99999974E-6 : f32
    %22 = vector.broadcast %cst_15 : f32 to vector<1x1xf32>
    %23 = arith.addf %19, %22 : vector<1x1xf32>
    %24 = math.rsqrt %23 : vector<1x1xf32>
    %25 = vector.broadcast %24 : vector<1x1xf32> to vector<1x32xf32>
    %26 = arith.mulf %21, %25 : vector<1x32xf32>
    %27 = arith.mulf %26, %7 : vector<1x32xf32>
    %28 = arith.addf %27, %8 : vector<1x32xf32>
    %c0_16 = arith.constant 0 : index
    %c0_17 = arith.constant 0 : index
    %29 = vector.load %arg6[%c0_16, %c0_17] : memref<32x128xf32, #tpu.memory_space<vmem>>, vector<32x128xf32>
    %cst_18 = arith.constant dense<0.000000e+00> : vector<1x128xf32>
    %30 = tpu.matmul %28, %29, %cst_18 {dimension_numbers = #tpu.dot_dimension_numbers<[1], [0], [0], [1], [0, 0, 1, 1], [], []>} : vector<1x32xf32>, vector<32x128xf32>, vector<1x128xf32> -> vector<1x128xf32>
    %c0_19 = arith.constant 0 : index
    %c0_20 = arith.constant 0 : index
    %31 = vector.load %arg7[%c0_19, %c0_20] : memref<1x128xf32, #tpu.memory_space<vmem>>, vector<1x128xf32>
    %32 = arith.addf %30, %31 : vector<1x128xf32>
    %cst_21 = arith.constant 5.000000e-01 : f32
    %33 = vector.broadcast %cst_21 : f32 to vector<1x128xf32>
    %34 = arith.mulf %32, %33 : vector<1x128xf32>
    %cst_22 = arith.constant 1.414210e+00 : f32
    %35 = vector.broadcast %cst_22 : f32 to vector<1x128xf32>
    %36 = arith.divf %32, %35 : vector<1x128xf32>
    %37 = math.erf %36 : vector<1x128xf32>
    %cst_23 = arith.constant 1.000000e+00 : f32
    %38 = vector.broadcast %cst_23 : f32 to vector<1x128xf32>
    %39 = arith.addf %38, %37 : vector<1x128xf32>
    %40 = arith.mulf %34, %39 : vector<1x128xf32>
    %c0_24 = arith.constant 0 : index
    %c0_25 = arith.constant 0 : index
    %41 = vector.load %arg8[%c0_24, %c0_25] : memref<128x32xf32, #tpu.memory_space<vmem>>, vector<128x32xf32>
    %cst_26 = arith.constant dense<0.000000e+00> : vector<1x32xf32>
    %42 = tpu.matmul %40, %41, %cst_26 {dimension_numbers = #tpu.dot_dimension_numbers<[1], [0], [0], [1], [0, 0, 1, 1], [], []>} : vector<1x128xf32>, vector<128x32xf32>, vector<1x32xf32> -> vector<1x32xf32>
    %c0_27 = arith.constant 0 : index
    %c0_28 = arith.constant 0 : index
    %43 = vector.load %arg9[%c0_27, %c0_28] : memref<1x32xf32, #tpu.memory_space<vmem>>, vector<1x32xf32>
    %44 = arith.addf %42, %43 : vector<1x32xf32>
    %45 = arith.addf %6, %44 : vector<1x32xf32>
    %c0_29 = arith.constant 0 : index
    %c0_30 = arith.constant 0 : index
    %46 = vector.load %arg10[%c0_29, %c0_30] : memref<1x32xf32, #tpu.memory_space<vmem>>, vector<1x32xf32>
    tpu.vector_store %arg10[%c0_29, %c0_30], %45 {strides = array<i32>} : memref<1x32xf32, #tpu.memory_space<vmem>>, vector<1x32xf32>,
    return
  }
}

module attributes {stable_mosaic.version = 11 : i64} {
  func.func @_head_kernel(%arg0: memref<1x32xf32, #tpu.memory_space<vmem>>, %arg1: memref<1x32xf32, #tpu.memory_space<vmem>>, %arg2: memref<1x32xf32, #tpu.memory_space<vmem>>, %arg3: memref<32x512xf32, #tpu.memory_space<vmem>>, %arg4: memref<1x512xf32, #tpu.memory_space<vmem>>) attributes {dimension_semantics = [], scalar_prefetch = 0 : i64, scratch_operands = 0 : i64, tpu.core_type = #tpu.core_type<tc>} {
    %c0 = arith.constant 0 : index
    %c0_0 = arith.constant 0 : index
    %0 = vector.load %arg0[%c0, %c0_0] : memref<1x32xf32, #tpu.memory_space<vmem>>, vector<1x32xf32>
    %c0_1 = arith.constant 0 : index
    %c0_2 = arith.constant 0 : index
    %1 = vector.load %arg1[%c0_1, %c0_2] : memref<1x32xf32, #tpu.memory_space<vmem>>, vector<1x32xf32>
    %c0_3 = arith.constant 0 : index
    %c0_4 = arith.constant 0 : index
    %2 = vector.load %arg2[%c0_3, %c0_4] : memref<1x32xf32, #tpu.memory_space<vmem>>, vector<1x32xf32>
    %cst = arith.constant dense<0.000000e+00> : vector<1xf32>
    %3 = vector.multi_reduction <add>, %0, %cst [1] : vector<1x32xf32> to vector<1xf32>
    %4 = vector.shape_cast %3 : vector<1xf32> to vector<1x1xf32>
    %cst_5 = arith.constant 3.200000e+01 : f32
    %5 = vector.broadcast %cst_5 : f32 to vector<1x1xf32>
    %6 = arith.divf %4, %5 : vector<1x1xf32>
    %7 = vector.broadcast %6 : vector<1x1xf32> to vector<1x32xf32>
    %8 = arith.subf %0, %7 : vector<1x32xf32>
    %9 = arith.mulf %8, %8 : vector<1x32xf32>
    %cst_6 = arith.constant dense<0.000000e+00> : vector<1xf32>
    %10 = vector.multi_reduction <add>, %9, %cst_6 [1] : vector<1x32xf32> to vector<1xf32>
    %11 = vector.shape_cast %10 : vector<1xf32> to vector<1x1xf32>
    %cst_7 = arith.constant 3.200000e+01 : f32
    %12 = vector.broadcast %cst_7 : f32 to vector<1x1xf32>
    %13 = arith.divf %11, %12 : vector<1x1xf32>
    %14 = vector.broadcast %6 : vector<1x1xf32> to vector<1x32xf32>
    %15 = arith.subf %0, %14 : vector<1x32xf32>
    %cst_8 = arith.constant 9.99999974E-6 : f32
    %16 = vector.broadcast %cst_8 : f32 to vector<1x1xf32>
    %17 = arith.addf %13, %16 : vector<1x1xf32>
    %18 = math.rsqrt %17 : vector<1x1xf32>
    %19 = vector.broadcast %18 : vector<1x1xf32> to vector<1x32xf32>
    %20 = arith.mulf %15, %19 : vector<1x32xf32>
    %21 = arith.mulf %20, %1 : vector<1x32xf32>
    %22 = arith.addf %21, %2 : vector<1x32xf32>
    %c0_9 = arith.constant 0 : index
    %c0_10 = arith.constant 0 : index
    %23 = vector.load %arg3[%c0_9, %c0_10] : memref<32x512xf32, #tpu.memory_space<vmem>>, vector<32x512xf32>
    %cst_11 = arith.constant dense<0.000000e+00> : vector<1x512xf32>
    %24 = tpu.matmul %22, %23, %cst_11 {dimension_numbers = #tpu.dot_dimension_numbers<[1], [0], [0], [1], [0, 0, 1, 1], [], []>} : vector<1x32xf32>, vector<32x512xf32>, vector<1x512xf32> -> vector<1x512xf32>
    %c0_12 = arith.constant 0 : index
    %c0_13 = arith.constant 0 : index
    %25 = vector.load %arg4[%c0_12, %c0_13] : memref<1x512xf32, #tpu.memory_space<vmem>>, vector<1x512xf32>
    tpu.vector_store %arg4[%c0_12, %c0_13], %24 {strides = array<i32>} : memref<1x512xf32, #tpu.memory_space<vmem>>, vector<1x512xf32>,
    return
  }
}

module attributes {stable_mosaic.version = 11 : i64} {
  func.func @_block_tail_kernel(%arg0: memref<8x32xf32, #tpu.memory_space<vmem>>, %arg1: memref<8x32xf32, #tpu.memory_space<vmem>>, %arg2: memref<32x32xf32, #tpu.memory_space<vmem>>, %arg3: memref<1x32xf32, #tpu.memory_space<vmem>>, %arg4: memref<1x32xf32, #tpu.memory_space<vmem>>, %arg5: memref<1x32xf32, #tpu.memory_space<vmem>>, %arg6: memref<32x128xf32, #tpu.memory_space<vmem>>, %arg7: memref<1x128xf32, #tpu.memory_space<vmem>>, %arg8: memref<128x32xf32, #tpu.memory_space<vmem>>, %arg9: memref<1x32xf32, #tpu.memory_space<vmem>>, %arg10: memref<8x32xf32, #tpu.memory_space<vmem>>) attributes {dimension_semantics = [], scalar_prefetch = 0 : i64, scratch_operands = 0 : i64, tpu.core_type = #tpu.core_type<tc>} {
    %c0 = arith.constant 0 : index
    %c0_0 = arith.constant 0 : index
    %0 = vector.load %arg0[%c0, %c0_0] : memref<8x32xf32, #tpu.memory_space<vmem>>, vector<8x32xf32>
    %c0_1 = arith.constant 0 : index
    %c0_2 = arith.constant 0 : index
    %1 = vector.load %arg1[%c0_1, %c0_2] : memref<8x32xf32, #tpu.memory_space<vmem>>, vector<8x32xf32>
    %c0_3 = arith.constant 0 : index
    %c0_4 = arith.constant 0 : index
    %2 = vector.load %arg2[%c0_3, %c0_4] : memref<32x32xf32, #tpu.memory_space<vmem>>, vector<32x32xf32>
    %cst = arith.constant dense<0.000000e+00> : vector<8x32xf32>
    %3 = tpu.matmul %1, %2, %cst {dimension_numbers = #tpu.dot_dimension_numbers<[1], [0], [0], [1], [0, 0, 1, 1], [], []>} : vector<8x32xf32>, vector<32x32xf32>, vector<8x32xf32> -> vector<8x32xf32>
    %c0_5 = arith.constant 0 : index
    %c0_6 = arith.constant 0 : index
    %4 = vector.load %arg3[%c0_5, %c0_6] : memref<1x32xf32, #tpu.memory_space<vmem>>, vector<1x32xf32>
    %5 = vector.broadcast %4 : vector<1x32xf32> to vector<8x32xf32>
    %6 = arith.addf %3, %5 : vector<8x32xf32>
    %7 = arith.addf %0, %6 : vector<8x32xf32>
    %c0_7 = arith.constant 0 : index
    %c0_8 = arith.constant 0 : index
    %8 = vector.load %arg4[%c0_7, %c0_8] : memref<1x32xf32, #tpu.memory_space<vmem>>, vector<1x32xf32>
    %c0_9 = arith.constant 0 : index
    %c0_10 = arith.constant 0 : index
    %9 = vector.load %arg5[%c0_9, %c0_10] : memref<1x32xf32, #tpu.memory_space<vmem>>, vector<1x32xf32>
    %cst_11 = arith.constant dense<0.000000e+00> : vector<8xf32>
    %10 = vector.multi_reduction <add>, %7, %cst_11 [1] : vector<8x32xf32> to vector<8xf32>
    %11 = vector.shape_cast %10 : vector<8xf32> to vector<8x1xf32>
    %cst_12 = arith.constant 3.200000e+01 : f32
    %12 = vector.broadcast %cst_12 : f32 to vector<8x1xf32>
    %13 = arith.divf %11, %12 : vector<8x1xf32>
    %14 = vector.broadcast %13 : vector<8x1xf32> to vector<8x32xf32>
    %15 = arith.subf %7, %14 : vector<8x32xf32>
    %16 = arith.mulf %15, %15 : vector<8x32xf32>
    %cst_13 = arith.constant dense<0.000000e+00> : vector<8xf32>
    %17 = vector.multi_reduction <add>, %16, %cst_13 [1] : vector<8x32xf32> to vector<8xf32>
    %18 = vector.shape_cast %17 : vector<8xf32> to vector<8x1xf32>
    %cst_14 = arith.constant 3.200000e+01 : f32
    %19 = vector.broadcast %cst_14 : f32 to vector<8x1xf32>
    %20 = arith.divf %18, %19 : vector<8x1xf32>
    %21 = vector.broadcast %13 : vector<8x1xf32> to vector<8x32xf32>
    %22 = arith.subf %7, %21 : vector<8x32xf32>
    %cst_15 = arith.constant 9.99999974E-6 : f32
    %23 = vector.broadcast %cst_15 : f32 to vector<8x1xf32>
    %24 = arith.addf %20, %23 : vector<8x1xf32>
    %25 = math.rsqrt %24 : vector<8x1xf32>
    %26 = vector.broadcast %25 : vector<8x1xf32> to vector<8x32xf32>
    %27 = arith.mulf %22, %26 : vector<8x32xf32>
    %28 = vector.broadcast %8 : vector<1x32xf32> to vector<8x32xf32>
    %29 = arith.mulf %27, %28 : vector<8x32xf32>
    %30 = vector.broadcast %9 : vector<1x32xf32> to vector<8x32xf32>
    %31 = arith.addf %29, %30 : vector<8x32xf32>
    %c0_16 = arith.constant 0 : index
    %c0_17 = arith.constant 0 : index
    %32 = vector.load %arg6[%c0_16, %c0_17] : memref<32x128xf32, #tpu.memory_space<vmem>>, vector<32x128xf32>
    %cst_18 = arith.constant dense<0.000000e+00> : vector<8x128xf32>
    %33 = tpu.matmul %31, %32, %cst_18 {dimension_numbers = #tpu.dot_dimension_numbers<[1], [0], [0], [1], [0, 0, 1, 1], [], []>} : vector<8x32xf32>, vector<32x128xf32>, vector<8x128xf32> -> vector<8x128xf32>
    %c0_19 = arith.constant 0 : index
    %c0_20 = arith.constant 0 : index
    %34 = vector.load %arg7[%c0_19, %c0_20] : memref<1x128xf32, #tpu.memory_space<vmem>>, vector<1x128xf32>
    %35 = vector.broadcast %34 : vector<1x128xf32> to vector<8x128xf32>
    %36 = arith.addf %33, %35 : vector<8x128xf32>
    %cst_21 = arith.constant 5.000000e-01 : f32
    %37 = vector.broadcast %cst_21 : f32 to vector<8x128xf32>
    %38 = arith.mulf %36, %37 : vector<8x128xf32>
    %cst_22 = arith.constant 1.414210e+00 : f32
    %39 = vector.broadcast %cst_22 : f32 to vector<8x128xf32>
    %40 = arith.divf %36, %39 : vector<8x128xf32>
    %41 = math.erf %40 : vector<8x128xf32>
    %cst_23 = arith.constant 1.000000e+00 : f32
    %42 = vector.broadcast %cst_23 : f32 to vector<8x128xf32>
    %43 = arith.addf %42, %41 : vector<8x128xf32>
    %44 = arith.mulf %38, %43 : vector<8x128xf32>
    %c0_24 = arith.constant 0 : index
    %c0_25 = arith.constant 0 : index
    %45 = vector.load %arg8[%c0_24, %c0_25] : memref<128x32xf32, #tpu.memory_space<vmem>>, vector<128x32xf32>
    %cst_26 = arith.constant dense<0.000000e+00> : vector<8x32xf32>
    %46 = tpu.matmul %44, %45, %cst_26 {dimension_numbers = #tpu.dot_dimension_numbers<[1], [0], [0], [1], [0, 0, 1, 1], [], []>} : vector<8x128xf32>, vector<128x32xf32>, vector<8x32xf32> -> vector<8x32xf32>
    %c0_27 = arith.constant 0 : index
    %c0_28 = arith.constant 0 : index
    %47 = vector.load %arg9[%c0_27, %c0_28] : memref<1x32xf32, #tpu.memory_space<vmem>>, vector<1x32xf32>
    %48 = vector.broadcast %47 : vector<1x32xf32> to vector<8x32xf32>
    %49 = arith.addf %46, %48 : vector<8x32xf32>
    %50 = arith.addf %7, %49 : vector<8x32xf32>
    %c0_29 = arith.constant 0 : index
    %c0_30 = arith.constant 0 : index
    %51 = vector.load %arg10[%c0_29, %c0_30] : memref<8x32xf32, #tpu.memory_space<vmem>>, vector<8x32xf32>
    tpu.vector_store %arg10[%c0_29, %c0_30], %50 {strides = array<i32>} : memref<8x32xf32, #tpu.memory_space<vmem>>, vector<8x32xf32>,
    return
  }
}

</mosaic_0001>

<llo_original>
// kernel: gpt_forward.6
$region0: #{gpt_forward.6}
  #allocation0 [shape = 'u32[]', space=smem, size = 0x4, offset = 0x4, fixed_abs, tag = 'smem constant byte address 0x4 - core index']
  #allocation1 [shape = 'u32[144,128]{1,0:T(1,128)}', space=vmem, size = 0x12000, scoped, tag = 'internal scratch']
  %s0 = inlined_call_operand.vmem [shape: f32[8,32], index: 0, kind: input, shape index: {}]
  %s1 = inlined_call_operand.vmem [shape: f32[8,32], index: 1, kind: input, shape index: {}]
  %s2 = inlined_call_operand.vmem [shape: f32[32,32], index: 2, kind: input, shape index: {}]
  %s3 = inlined_call_operand.vmem [shape: f32[1,32], index: 3, kind: input, shape index: {}]
  %s4 = inlined_call_operand.vmem [shape: f32[1,32], index: 4, kind: input, shape index: {}]
  %s5 = inlined_call_operand.vmem [shape: f32[1,32], index: 5, kind: input, shape index: {}]
  %s6 = inlined_call_operand.vmem [shape: f32[32,128], index: 6, kind: input, shape index: {}]
  %s7 = inlined_call_operand.vmem [shape: f32[1,128], index: 7, kind: input, shape index: {}]
  %s8 = inlined_call_operand.vmem [shape: f32[128,32], index: 8, kind: input, shape index: {}]
  %s9 = inlined_call_operand.vmem [shape: f32[1,32], index: 9, kind: input, shape index: {}]
  %s10 = inlined_call_operand.vmem [shape: f32[8,32], index: 10, kind: output, shape index: {}]
  %s11 = sld [smem:[#allocation0]]
  $region50: #{gpt_forward.6} parent=0
    _
  %s13 = ssub.s32 1, %s11
  %s14 = scalar_select 0, %s13, %s11
  // Predicated region
  $region2: #{gpt_forward.6} parent=0 // pred_check
    _
  $region3: #{gpt_forward.6} parent=0 // pred_check_branch
    %16 = sbr.rel (0) target = $region5
  $region4: #{gpt_forward.6} parent=0 // pred_region
    _
  $region5: #{gpt_forward.6} parent=0 // pred_fallthru
    _
  // Predicated region
  $region6: #{gpt_forward.6} parent=0 // pred_check
    _
  $region7: #{gpt_forward.6} parent=0 // pred_check_branch
    %18 = sbr.rel (0) target = $region9
  $region8: #{gpt_forward.6} parent=0 // pred_region
    _
  $region9: #{gpt_forward.6} parent=0 // pred_fallthru
    _
  // Predicated region
  $region10: #{gpt_forward.6} parent=0 // pred_check
    _
  $region11: #{gpt_forward.6} parent=0 // pred_check_branch
    %20 = sbr.rel (0) target = $region13
  $region12: #{gpt_forward.6} parent=0 // pred_region
    _
  $region13: #{gpt_forward.6} parent=0 // pred_fallthru
    _
  // Predicated region
  $region14: #{gpt_forward.6} parent=0 // pred_check
    _
  $region15: #{gpt_forward.6} parent=0 // pred_check_branch
    %22 = sbr.rel (0) target = $region17
  $region16: #{gpt_forward.6} parent=0 // pred_region
    _
  $region17: #{gpt_forward.6} parent=0 // pred_fallthru
    _
  // Predicated region
  $region18: #{gpt_forward.6} parent=0 // pred_check
    _
  $region19: #{gpt_forward.6} parent=0 // pred_check_branch
    %24 = sbr.rel (0) target = $region21
  $region20: #{gpt_forward.6} parent=0 // pred_region
    _
  $region21: #{gpt_forward.6} parent=0 // pred_fallthru
    _
  // Predicated region
  $region22: #{gpt_forward.6} parent=0 // pred_check
    _
  $region23: #{gpt_forward.6} parent=0 // pred_check_branch
    %26 = sbr.rel (0) target = $region25
  $region24: #{gpt_forward.6} parent=0 // pred_region
    _
  $region25: #{gpt_forward.6} parent=0 // pred_fallthru
    _
  // Predicated region
  $region26: #{gpt_forward.6} parent=0 // pred_check
    _
  $region27: #{gpt_forward.6} parent=0 // pred_check_branch
    %28 = sbr.rel (0) target = $region29
  $region28: #{gpt_forward.6} parent=0 // pred_region
    _
  $region29: #{gpt_forward.6} parent=0 // pred_fallthru
    _
  // Predicated region
  $region30: #{gpt_forward.6} parent=0 // pred_check
    _
  $region31: #{gpt_forward.6} parent=0 // pred_check_branch
    %30 = sbr.rel (0) target = $region33
  $region32: #{gpt_forward.6} parent=0 // pred_region
    _
  $region33: #{gpt_forward.6} parent=0 // pred_fallthru
    _
  // Predicated region
  $region34: #{gpt_forward.6} parent=0 // pred_check
    _
  $region35: #{gpt_forward.6} parent=0 // pred_check_branch
    %32 = sbr.rel (0) target = $region37
  $region36: #{gpt_forward.6} parent=0 // pred_region
    _
  $region37: #{gpt_forward.6} parent=0 // pred_fallthru
    _
  // Predicated region
  $region38: #{gpt_forward.6} parent=0 // pred_check
    _
  $region39: #{gpt_forward.6} parent=0 // pred_check_branch
    %34 = sbr.rel (0) target = $region41
  $region40: #{gpt_forward.6} parent=0 // pred_region
    _
  $region41: #{gpt_forward.6} parent=0 // pred_fallthru
    _
  %v35 = vld [vmem:[%s0] sm:$0xff]
  %v36 = vld [vmem:[%s1] sm:$0xff]
  %v37 = vld [vmem:[%s2] sm:$0xff]
  %v38 = vld [vmem:[%s2 + $0x8] sm:$0xff]
  %v39 = vld [vmem:[%s2 + $0x10] sm:$0xff]
  %v40 = vld [vmem:[%s2 + $0x18] sm:$0xff]
  %v41 = vld [vmem:[%s3] sm:$0x1]
  %v43 = vlaneseq
  %v44 = vshrl.u32 %v43, 7
  %v45 = vsub.s32 0, %v44
  %v46 = vrot.slane %v41, %v45
  %vm48 = vcmask 261120
  %v50 = vsel %vm48, %v36, 0
  %52 = vmatprep.subr.mxu0 0.0
  %53 = vmatpush1.msra.mxu0 0.0
  %54 = vmatprep.subr.mxu0 0.0
  %55 = vmatpush1.msra.mxu0 0.0
  %56 = vmatprep.subr.mxu0 0.0
  %57 = vmatpush1.msra.mxu0 0.0
  %58 = vmatprep.subr.mxu0 0.0
  %59 = vmatpush1.msra.mxu0 0.0
  %60 = vmatprep.subr.mxu0 0.0
  %61 = vmatpush1.msra.mxu0 0.0
  %62 = vmatprep.subr.mxu0 0.0
  %63 = vmatpush1.msra.mxu0 0.0
  %64 = vmatprep.subr.mxu0 0.0
  %65 = vmatpush1.msra.mxu0 0.0
  %66 = vmatprep.subr.mxu0 0.0
  %67 = vmatpush1.msra.mxu0 0.0
  %68 = vmatprep.subr.mxu0 0.0
  %69 = vmatpush1.msra.mxu0 0.0
  %70 = vmatprep.subr.mxu0 0.0
  %71 = vmatpush1.msra.mxu0 0.0
  %72 = vmatprep.subr.mxu0 0.0
  %73 = vmatpush1.msra.mxu0 0.0
  %74 = vmatprep.subr.mxu0 0.0
  %75 = vmatpush1.msra.mxu0 0.0
  %76 = vmatprep.subr.mxu0 0.0
  %77 = vmatpush1.msra.mxu0 %v40
  %78 = vmatprep.subr.mxu0 0.0
  %79 = vmatpush1.msra.mxu0 %v39
  %80 = vmatprep.subr.mxu0 0.0
  %81 = vmatpush1.msra.mxu0 %v38
  %82 = vmatprep.subr.mxu0 0.0
  %83 = vmatpush1.msra.mxu0 %v37
  %84 = vmatprep.subr.mxu0 0.0
  %85 = vmatpush2.msra.mxu0 0.0
  %86 = vmatprep.subr.mxu0 0.0
  %87 = vmatpush2.msra.mxu0 0.0
  %88 = vmatprep.subr.mxu0 0.0
  %89 = vmatpush2.msra.mxu0 0.0
  %90 = vmatprep.subr.mxu0 0.0
  %91 = vmatpush2.msra.mxu0 0.0
  %92 = vmatprep.subr.mxu0 0.0
  %93 = vmatpush2.msra.mxu0 0.0
  %94 = vmatprep.subr.mxu0 0.0
  %95 = vmatpush2.msra.mxu0 0.0
  %96 = vmatprep.subr.mxu0 0.0
  %97 = vmatpush2.msra.mxu0 0.0
  %98 = vmatprep.subr.mxu0 0.0
  %99 = vmatpush2.msra.mxu0 0.0
  %100 = vmatprep.subr.mxu0 0.0
  %101 = vmatpush2.msra.mxu0 0.0
  %102 = vmatprep.subr.mxu0 0.0
  %103 = vmatpush2.msra.mxu0 0.0
  %104 = vmatprep.subr.mxu0 0.0
  %105 = vmatpush2.msra.mxu0 0.0
  %106 = vmatprep.subr.mxu0 0.0
  %107 = vmatpush2.msra.mxu0 0.0
  %108 = vmatprep.subr.mxu0 0.0
  %109 = vmatpush2.msra.mxu0 0.0
  %110 = vmatprep.subr.mxu0 0.0
  %111 = vmatpush2.msra.mxu0 0.0
  %112 = vmatprep.subr.mxu0 0.0
  %113 = vmatpush2.msra.mxu0 0.0
  %114 = vmatprep.subr.mxu0 0.0
  %115 = vmatpush2.msra.mxu0 0.0
  %116 = vmatprep.mubr.f32.mxu0 0.0
  %117 = vmatmul.mubr.f32.gmra.mxu0 %v50
  %v118 = vpop.f32.mrf.mxu0
  %v119 = vadd.f32 %v46, %v118
  %v120 = vpop.f32.mrf.mxu0
  %121 = vdwg.mxu0
  %v122 = vadd.f32 %v35, %v119
  %v123 = vld [vmem:[%s4] sm:$0x1]
  %v124 = vld [vmem:[%s5] sm:$0x1]
  %v125 = vsel %vm48, %v122, 0.0
  %126 = vadd.xlane.f32.xlu0 %v125
  %v127 = vpop.xlane.xlu0 %126
  %v128 = vrcp.pop 32.0
  %v129 = vmul.f32 %v127, %v128
  %v130 = vsub.f32 %v122, %v129
  %v131 = vmul.f32 %v130, %v130
  %v132 = vsel %vm48, %v131, 0.0
  %133 = vadd.xlane.f32.xlu0 %v132
  %v134 = vpop.xlane.xlu0 %133
  %v135 = vmul.f32 %v134, %v128
  %v136 = vadd.f32 %v135, 1e-05
  %v137 = vrsqrt.pop %v136
  %v138 = vmul.f32 %v130, %v137
  %v140 = vlaneseq
  %v141 = vshrl.u32 %v140, 7
  %v142 = vsub.s32 0, %v141
  %v143 = vrot.slane %v123, %v142
  %v145 = vmul.f32 %v138, %v143
  %v147 = vlaneseq
  %v148 = vshrl.u32 %v147, 7
  %v149 = vsub.s32 0, %v148
  %v150 = vrot.slane %v124, %v149
  %v152 = vadd.f32 %v145, %v150
  %v153 = vld [vmem:[%s6] sm:$0xff]
  %v154 = vld [vmem:[%s6 + $0x8] sm:$0xff]
  %v155 = vld [vmem:[%s6 + $0x10] sm:$0xff]
  %v156 = vld [vmem:[%s6 + $0x18] sm:$0xff]
  %v157 = vld [vmem:[%s7] sm:$0x1]
  %v159 = vlaneseq
  %v160 = vshrl.u32 %v159, 7
  %v161 = vsub.s32 0, %v160
  %v162 = vrot.slane %v157, %v161
  %v165 = vsel %vm48, %v152, 0
  %167 = vmatprep.subr.mxu0 0.0
  %168 = vmatpush1.msra.mxu0 0.0
  %169 = vmatprep.subr.mxu0 0.0
  %170 = vmatpush1.msra.mxu0 0.0
  %171 = vmatprep.subr.mxu0 0.0
  %172 = vmatpush1.msra.mxu0 0.0
  %173 = vmatprep.subr.mxu0 0.0
  %174 = vmatpush1.msra.mxu0 0.0
  %175 = vmatprep.subr.mxu0 0.0
  %176 = vmatpush1.msra.mxu0 0.0
  %177 = vmatprep.subr.mxu0 0.0
  %178 = vmatpush1.msra.mxu0 0.0
  %179 = vmatprep.subr.mxu0 0.0
  %180 = vmatpush1.msra.mxu0 0.0
  %181 = vmatprep.subr.mxu0 0.0
  %182 = vmatpush1.msra.mxu0 0.0
  %183 = vmatprep.subr.mxu0 0.0
  %184 = vmatpush1.msra.mxu0 0.0
  %185 = vmatprep.subr.mxu0 0.0
  %186 = vmatpush1.msra.mxu0 0.0
  %187 = vmatprep.subr.mxu0 0.0
  %188 = vmatpush1.msra.mxu0 0.0
  %189 = vmatprep.subr.mxu0 0.0
  %190 = vmatpush1.msra.mxu0 0.0
  %191 = vmatprep.subr.mxu0 0.0
  %192 = vmatpush1.msra.mxu0 %v156
  %193 = vmatprep.subr.mxu0 0.0
  %194 = vmatpush1.msra.mxu0 %v155
  %195 = vmatprep.subr.mxu0 0.0
  %196 = vmatpush1.msra.mxu0 %v154
  %197 = vmatprep.subr.mxu0 0.0
  %198 = vmatpush1.msra.mxu0 %v153
  %199 = vmatprep.subr.mxu0 0.0
  %200 = vmatpush2.msra.mxu0 0.0
  %201 = vmatprep.subr.mxu0 0.0
  %202 = vmatpush2.msra.mxu0 0.0
  %203 = vmatprep.subr.mxu0 0.0
  %204 = vmatpush2.msra.mxu0 0.0
  %205 = vmatprep.subr.mxu0 0.0
  %206 = vmatpush2.msra.mxu0 0.0
  %207 = vmatprep.subr.mxu0 0.0
  %208 = vmatpush2.msra.mxu0 0.0
  %209 = vmatprep.subr.mxu0 0.0
  %210 = vmatpush2.msra.mxu0 0.0
  %211 = vmatprep.subr.mxu0 0.0
  %212 = vmatpush2.msra.mxu0 0.0
  %213 = vmatprep.subr.mxu0 0.0
  %214 = vmatpush2.msra.mxu0 0.0
  %215 = vmatprep.subr.mxu0 0.0
  %216 = vmatpush2.msra.mxu0 0.0
  %217 = vmatprep.subr.mxu0 0.0
  %218 = vmatpush2.msra.mxu0 0.0
  %219 = vmatprep.subr.mxu0 0.0
  %220 = vmatpush2.msra.mxu0 0.0
  %221 = vmatprep.subr.mxu0 0.0
  %222 = vmatpush2.msra.mxu0 0.0
  %223 = vmatprep.subr.mxu0 0.0
  %224 = vmatpush2.msra.mxu0 0.0
  %225 = vmatprep.subr.mxu0 0.0
  %226 = vmatpush2.msra.mxu0 0.0
  %227 = vmatprep.subr.mxu0 0.0
  %228 = vmatpush2.msra.mxu0 0.0
  %229 = vmatprep.subr.mxu0 0.0
  %230 = vmatpush2.msra.mxu0 0.0
  %231 = vmatprep.mubr.f32.mxu0 0.0
  %232 = vmatmul.mubr.f32.gmra.mxu0 %v165
  %v233 = vpop.f32.mrf.mxu0
  %v234 = vadd.f32 %v162, %v233
  %v235 = vpop.f32.mrf.mxu0
  %236 = vdwg.mxu0
  %v237 = vmul.f32 %v234, 0.5
  %v238 = vrcp.pop 1.41421
  %v239 = vmul.f32 %v234, %v238
  %v240 = verf.f32.pop %v239
  %v241 = vadd.f32 %v240, 1.0
  %v242 = vmul.f32 %v237, %v241
  %v243 = vld [vmem:[%s8] sm:$0xff]
  %v244 = vld [vmem:[%s8 + $0x8] sm:$0xff]
  %v245 = vld [vmem:[%s8 + $0x10] sm:$0xff]
  %v246 = vld [vmem:[%s8 + $0x18] sm:$0xff]
  %v247 = vld [vmem:[%s8 + $0x20] sm:$0xff]
  %v248 = vld [vmem:[%s8 + $0x28] sm:$0xff]
  %v249 = vld [vmem:[%s8 + $0x30] sm:$0xff]
  %v250 = vld [vmem:[%s8 + $0x38] sm:$0xff]
  %v251 = vld [vmem:[%s8 + $0x40] sm:$0xff]
  %v252 = vld [vmem:[%s8 + $0x48] sm:$0xff]
  %v253 = vld [vmem:[%s8 + $0x50] sm:$0xff]
  %v254 = vld [vmem:[%s8 + $0x58] sm:$0xff]
  %v255 = vld [vmem:[%s8 + $0x60] sm:$0xff]
  %v256 = vld [vmem:[%s8 + $0x68] sm:$0xff]
  %v257 = vld [vmem:[%s8 + $0x70] sm:$0xff]
  %v258 = vld [vmem:[%s8 + $0x78] sm:$0xff]
  %v259 = vld [vmem:[%s9] sm:$0x1]
  %v261 = vlaneseq
  %v262 = vshrl.u32 %v261, 7
  %v263 = vsub.s32 0, %v262
  %v264 = vrot.slane %v259, %v263
  %266 = vmatprep.subr.mxu0 0.0
  %267 = vmatpush1.msra.mxu0 %v258
  %268 = vmatprep.subr.mxu0 0.0
  %269 = vmatpush1.msra.mxu0 %v257
  %270 = vmatprep.subr.mxu0 0.0
  %271 = vmatpush1.msra.mxu0 %v256
  %272 = vmatprep.subr.mxu0 0.0
  %273 = vmatpush1.msra.mxu0 %v255
  %274 = vmatprep.subr.mxu0 0.0
  %275 = vmatpush1.msra.mxu0 %v254
  %276 = vmatprep.subr.mxu0 0.0
  %277 = vmatpush1.msra.mxu0 %v253
  %278 = vmatprep.subr.mxu0 0.0
  %279 = vmatpush1.msra.mxu0 %v252
  %280 = vmatprep.subr.mxu0 0.0
  %281 = vmatpush1.msra.mxu0 %v251
  %282 = vmatprep.subr.mxu0 0.0
  %283 = vmatpush1.msra.mxu0 %v250
  %284 = vmatprep.subr.mxu0 0.0
  %285 = vmatpush1.msra.mxu0 %v249
  %286 = vmatprep.subr.mxu0 0.0
  %287 = vmatpush1.msra.mxu0 %v248
  %288 = vmatprep.subr.mxu0 0.0
  %289 = vmatpush1.msra.mxu0 %v247
  %290 = vmatprep.subr.mxu0 0.0
  %291 = vmatpush1.msra.mxu0 %v246
  %292 = vmatprep.subr.mxu0 0.0
  %293 = vmatpush1.msra.mxu0 %v245
  %294 = vmatprep.subr.mxu0 0.0
  %295 = vmatpush1.msra.mxu0 %v244
  %296 = vmatprep.subr.mxu0 0.0
  %297 = vmatpush1.msra.mxu0 %v243
  %298 = vmatprep.subr.mxu0 0.0
  %299 = vmatpush2.msra.mxu0 0.0
  %300 = vmatprep.subr.mxu0 0.0
  %301 = vmatpush2.msra.mxu0 0.0
  %302 = vmatprep.subr.mxu0 0.0
  %303 = vmatpush2.msra.mxu0 0.0
  %304 = vmatprep.subr.mxu0 0.0
  %305 = vmatpush2.msra.mxu0 0.0
  %306 = vmatprep.subr.mxu0 0.0
  %307 = vmatpush2.msra.mxu0 0.0
  %308 = vmatprep.subr.mxu0 0.0
  %309 = vmatpush2.msra.mxu0 0.0
  %310 = vmatprep.subr.mxu0 0.0
  %311 = vmatpush2.msra.mxu0 0.0
  %312 = vmatprep.subr.mxu0 0.0
  %313 = vmatpush2.msra.mxu0 0.0
  %314 = vmatprep.subr.mxu0 0.0
  %315 = vmatpush2.msra.mxu0 0.0
  %316 = vmatprep.subr.mxu0 0.0
  %317 = vmatpush2.msra.mxu0 0.0
  %318 = vmatprep.subr.mxu0 0.0
  %319 = vmatpush2.msra.mxu0 0.0
  %320 = vmatprep.subr.mxu0 0.0
  %321 = vmatpush2.msra.mxu0 0.0
  %322 = vmatprep.subr.mxu0 0.0
  %323 = vmatpush2.msra.mxu0 0.0
  %324 = vmatprep.subr.mxu0 0.0
  %325 = vmatpush2.msra.mxu0 0.0
  %326 = vmatprep.subr.mxu0 0.0
  %327 = vmatpush2.msra.mxu0 0.0
  %328 = vmatprep.subr.mxu0 0.0
  %329 = vmatpush2.msra.mxu0 0.0
  %330 = vmatprep.mubr.f32.mxu0 0.0
  %331 = vmatmul.mubr.f32.gmra.mxu0 %v242
  %v332 = vpop.f32.mrf.mxu0
  %v333 = vadd.f32 %v264, %v332
  %v334 = vpop.f32.mrf.mxu0
  %335 = vdwg.mxu0
  %v336 = vadd.f32 %v122, %v333
  %337 = vst.msk [vmem:[%s10] sm:$0xff] %vm48, %v336
  // Predicated region
  $region42: #{gpt_forward.6} parent=0 // pred_check
    _
  $region43: #{gpt_forward.6} parent=0 // pred_check_branch
    %339 = sbr.rel (0) target = $region45
  $region44: #{gpt_forward.6} parent=0 // pred_region
    _
  $region45: #{gpt_forward.6} parent=0 // pred_fallthru
    _
  // Predicated region
  $region46: #{gpt_forward.6} parent=0 // pred_check
    _
  $region47: #{gpt_forward.6} parent=0 // pred_check_branch
    %341 = sbr.rel (0) target = $region49
  $region48: #{gpt_forward.6} parent=0 // pred_region
    _
  $region49: #{gpt_forward.6} parent=0 // pred_fallthru
    _

// kernel: gpt_forward.9
$region0: #{gpt_forward.9}
  #allocation0 [shape = 'u32[]', space=smem, size = 0x4, offset = 0x4, fixed_abs, tag = 'smem constant byte address 0x4 - core index']
  #allocation1 [shape = 'u32[144,128]{1,0:T(1,128)}', space=vmem, size = 0x12000, scoped, tag = 'internal scratch']
  %s0 = inlined_call_operand.vmem [shape: f32[1,32], index: 0, kind: input, shape index: {}]
  %s1 = inlined_call_operand.vmem [shape: f32[1,32], index: 1, kind: input, shape index: {}]
  %s2 = inlined_call_operand.vmem [shape: f32[1,32], index: 2, kind: input, shape index: {}]
  %s3 = inlined_call_operand.vmem [shape: f32[32,512], index: 3, kind: input, shape index: {}]
  %s4 = inlined_call_operand.vmem [shape: f32[1,512], index: 4, kind: output, shape index: {}]
  %s5 = sld [smem:[#allocation0]]
  $region26: #{gpt_forward.9} parent=0
    _
  %s7 = ssub.s32 1, %s5
  %s8 = scalar_select 0, %s7, %s5
  // Predicated region
  $region2: #{gpt_forward.9} parent=0 // pred_check
    _
  $region3: #{gpt_forward.9} parent=0 // pred_check_branch
    %10 = sbr.rel (0) target = $region5
  $region4: #{gpt_forward.9} parent=0 // pred_region
    _
  $region5: #{gpt_forward.9} parent=0 // pred_fallthru
    _
  // Predicated region
  $region6: #{gpt_forward.9} parent=0 // pred_check
    _
  $region7: #{gpt_forward.9} parent=0 // pred_check_branch
    %12 = sbr.rel (0) target = $region9
  $region8: #{gpt_forward.9} parent=0 // pred_region
    _
  $region9: #{gpt_forward.9} parent=0 // pred_fallthru
    _
  // Predicated region
  $region10: #{gpt_forward.9} parent=0 // pred_check
    _
  $region11: #{gpt_forward.9} parent=0 // pred_check_branch
    %14 = sbr.rel (0) target = $region13
  $region12: #{gpt_forward.9} parent=0 // pred_region
    _
  $region13: #{gpt_forward.9} parent=0 // pred_fallthru
    _
  // Predicated region
  $region14: #{gpt_forward.9} parent=0 // pred_check
    _
  $region15: #{gpt_forward.9} parent=0 // pred_check_branch
    %16 = sbr.rel (0) target = $region17
  $region16: #{gpt_forward.9} parent=0 // pred_region
    _
  $region17: #{gpt_forward.9} parent=0 // pred_fallthru
    _
  %v17 = vld [vmem:[%s0] sm:$0x1]
  %v18 = vld [vmem:[%s1] sm:$0x1]
  %v19 = vld [vmem:[%s2] sm:$0x1]
  %vm20 = vcmask 253952
  %v21 = vsel %vm20, %v17, 0.0
  %22 = vadd.xlane.f32.xlu0 %v21
  %v23 = vpop.xlane.xlu0 %22
  %v24 = vrcp.pop 32.0
  %v25 = vmul.f32 %v23, %v24
  %v26 = vsub.f32 %v17, %v25
  %v27 = vmul.f32 %v26, %v26
  %v28 = vsel %vm20, %v27, 0.0
  %29 = vadd.xlane.f32.xlu0 %v28
  %v30 = vpop.xlane.xlu0 %29
  %v31 = vmul.f32 %v30, %v24
  %v32 = vadd.f32 %v31, 1e-05
  %v33 = vrsqrt.pop %v32
  %v34 = vmul.f32 %v26, %v33
  %v35 = vmul.f32 %v34, %v18
  %v36 = vadd.f32 %v35, %v19
  %v37 = vld [vmem:[%s3] sm:$0xff]
  %v38 = vld [vmem:[%s3 + $0x8] sm:$0xff]
  %v39 = vld [vmem:[%s3 + $0x10] sm:$0xff]
  %v40 = vld [vmem:[%s3 + $0x18] sm:$0xff]
  %v41 = vld [vmem:[%s3 + $0x20] sm:$0xff]
  %v42 = vld [vmem:[%s3 + $0x28] sm:$0xff]
  %v43 = vld [vmem:[%s3 + $0x30] sm:$0xff]
  %v44 = vld [vmem:[%s3 + $0x38] sm:$0xff]
  %v45 = vld [vmem:[%s3 + $0x40] sm:$0xff]
  %v46 = vld [vmem:[%s3 + $0x48] sm:$0xff]
  %v47 = vld [vmem:[%s3 + $0x50] sm:$0xff]
  %v48 = vld [vmem:[%s3 + $0x58] sm:$0xff]
  %v49 = vld [vmem:[%s3 + $0x60] sm:$0xff]
  %v50 = vld [vmem:[%s3 + $0x68] sm:$0xff]
  %v51 = vld [vmem:[%s3 + $0x70] sm:$0xff]
  %v52 = vld [vmem:[%s3 + $0x78] sm:$0xff]
  %vm53 = vcmask 261120
  %v55 = vsel %vm53, %v36, 0
  %57 = vmatprep.subr.mxu0 0.0
  %58 = vmatpush1.msra.mxu0 0.0
  %59 = vmatprep.subr.mxu0 0.0
  %60 = vmatpush1.msra.mxu0 0.0
  %61 = vmatprep.subr.mxu0 0.0
  %62 = vmatpush1.msra.mxu0 0.0
  %63 = vmatprep.subr.mxu0 0.0
  %64 = vmatpush1.msra.mxu0 0.0
  %65 = vmatprep.subr.mxu0 0.0
  %66 = vmatpush1.msra.mxu0 0.0
  %67 = vmatprep.subr.mxu0 0.0
  %68 = vmatpush1.msra.mxu0 0.0
  %69 = vmatprep.subr.mxu0 0.0
  %70 = vmatpush1.msra.mxu0 0.0
  %71 = vmatprep.subr.mxu0 0.0
  %72 = vmatpush1.msra.mxu0 0.0
  %73 = vmatprep.subr.mxu0 0.0
  %74 = vmatpush1.msra.mxu0 0.0
  %75 = vmatprep.subr.mxu0 0.0
  %76 = vmatpush1.msra.mxu0 0.0
  %77 = vmatprep.subr.mxu0 0.0
  %78 = vmatpush1.msra.mxu0 0.0
  %79 = vmatprep.subr.mxu0 0.0
  %80 = vmatpush1.msra.mxu0 0.0
  %81 = vmatprep.subr.mxu0 %v50
  %82 = vmatpush1.msra.mxu0 %v49
  %83 = vmatprep.subr.mxu0 %v46
  %84 = vmatpush1.msra.mxu0 %v45
  %85 = vmatprep.subr.mxu0 %v42
  %86 = vmatpush1.msra.mxu0 %v41
  %87 = vmatprep.subr.mxu0 %v38
  %88 = vmatpush1.msra.mxu0 %v37
  %89 = vmatprep.subr.mxu0 0.0
  %90 = vmatpush2.msra.mxu0 0.0
  %91 = vmatprep.subr.mxu0 0.0
  %92 = vmatpush2.msra.mxu0 0.0
  %93 = vmatprep.subr.mxu0 0.0
  %94 = vmatpush2.msra.mxu0 0.0
  %95 = vmatprep.subr.mxu0 0.0
  %96 = vmatpush2.msra.mxu0 0.0
  %97 = vmatprep.subr.mxu0 0.0
  %98 = vmatpush2.msra.mxu0 0.0
  %99 = vmatprep.subr.mxu0 0.0
  %100 = vmatpush2.msra.mxu0 0.0
  %101 = vmatprep.subr.mxu0 0.0
  %102 = vmatpush2.msra.mxu0 0.0
  %103 = vmatprep.subr.mxu0 0.0
  %104 = vmatpush2.msra.mxu0 0.0
  %105 = vmatprep.subr.mxu0 0.0
  %106 = vmatpush2.msra.mxu0 0.0
  %107 = vmatprep.subr.mxu0 0.0
  %108 = vmatpush2.msra.mxu0 0.0
  %109 = vmatprep.subr.mxu0 0.0
  %110 = vmatpush2.msra.mxu0 0.0
  %111 = vmatprep.subr.mxu0 0.0
  %112 = vmatpush2.msra.mxu0 0.0
  %113 = vmatprep.subr.mxu0 0.0
  %114 = vmatpush2.msra.mxu0 0.0
  %115 = vmatprep.subr.mxu0 0.0
  %116 = vmatpush2.msra.mxu0 0.0
  %117 = vmatprep.subr.mxu0 0.0
  %118 = vmatpush2.msra.mxu0 0.0
  %119 = vmatprep.subr.mxu0 0.0
  %120 = vmatpush2.msra.mxu0 0.0
  %121 = vmatprep.mubr.f32.mxu0 0.0
  %122 = vmatmul.mubr.f32.gmra.mxu0 %v55
  %v123 = vpop.f32.mrf.mxu0
  %v124 = vadd.f32 0.0, %v123
  %v125 = vpop.f32.mrf.mxu0
  %v126 = vadd.f32 0.0, %v125
  %127 = vdwg.mxu0
  %128 = vmatprep.subr.mxu0 0.0
  %129 = vmatpush1.msra.mxu0 0.0
  %130 = vmatprep.subr.mxu0 0.0
  %131 = vmatpush1.msra.mxu0 0.0
  %132 = vmatprep.subr.mxu0 0.0
  %133 = vmatpush1.msra.mxu0 0.0
  %134 = vmatprep.subr.mxu0 0.0
  %135 = vmatpush1.msra.mxu0 0.0
  %136 = vmatprep.subr.mxu0 0.0
  %137 = vmatpush1.msra.mxu0 0.0
  %138 = vmatprep.subr.mxu0 0.0
  %139 = vmatpush1.msra.mxu0 0.0
  %140 = vmatprep.subr.mxu0 0.0
  %141 = vmatpush1.msra.mxu0 0.0
  %142 = vmatprep.subr.mxu0 0.0
  %143 = vmatpush1.msra.mxu0 0.0
  %144 = vmatprep.subr.mxu0 0.0
  %145 = vmatpush1.msra.mxu0 0.0
  %146 = vmatprep.subr.mxu0 0.0
  %147 = vmatpush1.msra.mxu0 0.0
  %148 = vmatprep.subr.mxu0 0.0
  %149 = vmatpush1.msra.mxu0 0.0
  %150 = vmatprep.subr.mxu0 0.0
  %151 = vmatpush1.msra.mxu0 0.0
  %152 = vmatprep.subr.mxu0 %v52
  %153 = vmatpush1.msra.mxu0 %v51
  %154 = vmatprep.subr.mxu0 %v48
  %155 = vmatpush1.msra.mxu0 %v47
  %156 = vmatprep.subr.mxu0 %v44
  %157 = vmatpush1.msra.mxu0 %v43
  %158 = vmatprep.subr.mxu0 %v40
  %159 = vmatpush1.msra.mxu0 %v39
  %160 = vmatprep.subr.mxu0 0.0
  %161 = vmatpush2.msra.mxu0 0.0
  %162 = vmatprep.subr.mxu0 0.0
  %163 = vmatpush2.msra.mxu0 0.0
  %164 = vmatprep.subr.mxu0 0.0
  %165 = vmatpush2.msra.mxu0 0.0
  %166 = vmatprep.subr.mxu0 0.0
  %167 = vmatpush2.msra.mxu0 0.0
  %168 = vmatprep.subr.mxu0 0.0
  %169 = vmatpush2.msra.mxu0 0.0
  %170 = vmatprep.subr.mxu0 0.0
  %171 = vmatpush2.msra.mxu0 0.0
  %172 = vmatprep.subr.mxu0 0.0
  %173 = vmatpush2.msra.mxu0 0.0
  %174 = vmatprep.subr.mxu0 0.0
  %175 = vmatpush2.msra.mxu0 0.0
  %176 = vmatprep.subr.mxu0 0.0
  %177 = vmatpush2.msra.mxu0 0.0
  %178 = vmatprep.subr.mxu0 0.0
  %179 = vmatpush2.msra.mxu0 0.0
  %180 = vmatprep.subr.mxu0 0.0
  %181 = vmatpush2.msra.mxu0 0.0
  %182 = vmatprep.subr.mxu0 0.0
  %183 = vmatpush2.msra.mxu0 0.0
  %184 = vmatprep.subr.mxu0 0.0
  %185 = vmatpush2.msra.mxu0 0.0
  %186 = vmatprep.subr.mxu0 0.0
  %187 = vmatpush2.msra.mxu0 0.0
  %188 = vmatprep.subr.mxu0 0.0
  %189 = vmatpush2.msra.mxu0 0.0
  %190 = vmatprep.subr.mxu0 0.0
  %191 = vmatpush2.msra.mxu0 0.0
  %192 = vmatprep.mubr.f32.mxu0 0.0
  %193 = vmatmul.mubr.f32.gmra.mxu0 %v55
  %v194 = vpop.f32.mrf.mxu0
  %v195 = vadd.f32 0.0, %v194
  %v196 = vpop.f32.mrf.mxu0
  %v197 = vadd.f32 0.0, %v196
  %198 = vdwg.mxu0
  %v203 = vcombine.low %v124, %v126
  %v204 = vcombine.low %v195, %v197
  %v206 = vunpack.c.l.s4 1966171168
  %v207 = vunpack.c.0.s8 %v206
  %v208 = vlaneseq
  %v209 = vshrl.u32 %v208, 7
  %v210 = vsub.s32 %v207, %v209
  %v211 = vrot.slane %v203, %v210
  %v213 = vunpack.c.l.s4 1966171168
  %v214 = vunpack.c.0.s8 %v213
  %v215 = vlaneseq
  %v216 = vshrl.u32 %v215, 7
  %v217 = vsub.s32 %v214, %v216
  %v218 = vrot.slane %v204, %v217
  %v219 = vcombine.low %v211, %v218
  %v221 = vunpack.c.l.s4 1966171168
  %v222 = vunpack.c.0.s8 %v221
  %v223 = vlaneseq
  %v224 = vshrl.u32 %v223, 7
  %v225 = vsub.s32 %v222, %v224
  %v226 = vrot.slane %v219, %v225
  %v228 = vlaneseq
  %vm229 = vcmp.ge.s32.totalorder %v228, 0
  %vm230 = vcmp.lt.s32.totalorder %v228, 512
  %vm231 = vmand %vm229, %vm230
  %232 = vst.msk [vmem:[%s4] sm:$0xf] %vm231, %v226
  // Predicated region
  $region18: #{gpt_forward.9} parent=0 // pred_check
    _
  $region19: #{gpt_forward.9} parent=0 // pred_check_branch
    %234 = sbr.rel (0) target = $region21
  $region20: #{gpt_forward.9} parent=0 // pred_region
    _
  $region21: #{gpt_forward.9} parent=0 // pred_fallthru
    _
  // Predicated region
  $region22: #{gpt_forward.9} parent=0 // pred_check
    _
  $region23: #{gpt_forward.9} parent=0 // pred_check_branch
    %236 = sbr.rel (0) target = $region25
  $region24: #{gpt_forward.9} parent=0 // pred_region
    _
  $region25: #{gpt_forward.9} parent=0 // pred_fallthru
    _

// kernel: gpt_forward.8
$region0: #{gpt_forward.8}
  #allocation0 [shape = 'u32[]', space=smem, size = 0x4, offset = 0x4, fixed_abs, tag = 'smem constant byte address 0x4 - core index']
  #allocation1 [shape = 'u32[144,128]{1,0:T(1,128)}', space=vmem, size = 0x12000, scoped, tag = 'internal scratch']
  %s0 = inlined_call_operand.vmem [shape: f32[1,32], index: 0, kind: input, shape index: {}]
  %s1 = inlined_call_operand.vmem [shape: f32[1,32], index: 1, kind: input, shape index: {}]
  %s2 = inlined_call_operand.vmem [shape: f32[32,32], index: 2, kind: input, shape index: {}]
  %s3 = inlined_call_operand.vmem [shape: f32[1,32], index: 3, kind: input, shape index: {}]
  %s4 = inlined_call_operand.vmem [shape: f32[1,32], index: 4, kind: input, shape index: {}]
  %s5 = inlined_call_operand.vmem [shape: f32[1,32], index: 5, kind: input, shape index: {}]
  %s6 = inlined_call_operand.vmem [shape: f32[32,128], index: 6, kind: input, shape index: {}]
  %s7 = inlined_call_operand.vmem [shape: f32[1,128], index: 7, kind: input, shape index: {}]
  %s8 = inlined_call_operand.vmem [shape: f32[128,32], index: 8, kind: input, shape index: {}]
  %s9 = inlined_call_operand.vmem [shape: f32[1,32], index: 9, kind: input, shape index: {}]
  %s10 = inlined_call_operand.vmem [shape: f32[1,32], index: 10, kind: output, shape index: {}]
  %s11 = sld [smem:[#allocation0]]
  $region50: #{gpt_forward.8} parent=0
    _
  %s13 = ssub.s32 1, %s11
  %s14 = scalar_select 0, %s13, %s11
  // Predicated region
  $region2: #{gpt_forward.8} parent=0 // pred_check
    _
  $region3: #{gpt_forward.8} parent=0 // pred_check_branch
    %16 = sbr.rel (0) target = $region5
  $region4: #{gpt_forward.8} parent=0 // pred_region
    _
  $region5: #{gpt_forward.8} parent=0 // pred_fallthru
    _
  // Predicated region
  $region6: #{gpt_forward.8} parent=0 // pred_check
    _
  $region7: #{gpt_forward.8} parent=0 // pred_check_branch
    %18 = sbr.rel (0) target = $region9
  $region8: #{gpt_forward.8} parent=0 // pred_region
    _
  $region9: #{gpt_forward.8} parent=0 // pred_fallthru
    _
  // Predicated region
  $region10: #{gpt_forward.8} parent=0 // pred_check
    _
  $region11: #{gpt_forward.8} parent=0 // pred_check_branch
    %20 = sbr.rel (0) target = $region13
  $region12: #{gpt_forward.8} parent=0 // pred_region
    _
  $region13: #{gpt_forward.8} parent=0 // pred_fallthru
    _
  // Predicated region
  $region14: #{gpt_forward.8} parent=0 // pred_check
    _
  $region15: #{gpt_forward.8} parent=0 // pred_check_branch
    %22 = sbr.rel (0) target = $region17
  $region16: #{gpt_forward.8} parent=0 // pred_region
    _
  $region17: #{gpt_forward.8} parent=0 // pred_fallthru
    _
  // Predicated region
  $region18: #{gpt_forward.8} parent=0 // pred_check
    _
  $region19: #{gpt_forward.8} parent=0 // pred_check_branch
    %24 = sbr.rel (0) target = $region21
  $region20: #{gpt_forward.8} parent=0 // pred_region
    _
  $region21: #{gpt_forward.8} parent=0 // pred_fallthru
    _
  // Predicated region
  $region22: #{gpt_forward.8} parent=0 // pred_check
    _
  $region23: #{gpt_forward.8} parent=0 // pred_check_branch
    %26 = sbr.rel (0) target = $region25
  $region24: #{gpt_forward.8} parent=0 // pred_region
    _
  $region25: #{gpt_forward.8} parent=0 // pred_fallthru
    _
  // Predicated region
  $region26: #{gpt_forward.8} parent=0 // pred_check
    _
  $region27: #{gpt_forward.8} parent=0 // pred_check_branch
    %28 = sbr.rel (0) target = $region29
  $region28: #{gpt_forward.8} parent=0 // pred_region
    _
  $region29: #{gpt_forward.8} parent=0 // pred_fallthru
    _
  // Predicated region
  $region30: #{gpt_forward.8} parent=0 // pred_check
    _
  $region31: #{gpt_forward.8} parent=0 // pred_check_branch
    %30 = sbr.rel (0) target = $region33
  $region32: #{gpt_forward.8} parent=0 // pred_region
    _
  $region33: #{gpt_forward.8} parent=0 // pred_fallthru
    _
  // Predicated region
  $region34: #{gpt_forward.8} parent=0 // pred_check
    _
  $region35: #{gpt_forward.8} parent=0 // pred_check_branch
    %32 = sbr.rel (0) target = $region37
  $region36: #{gpt_forward.8} parent=0 // pred_region
    _
  $region37: #{gpt_forward.8} parent=0 // pred_fallthru
    _
  // Predicated region
  $region38: #{gpt_forward.8} parent=0 // pred_check
    _
  $region39: #{gpt_forward.8} parent=0 // pred_check_branch
    %34 = sbr.rel (0) target = $region41
  $region40: #{gpt_forward.8} parent=0 // pred_region
    _
  $region41: #{gpt_forward.8} parent=0 // pred_fallthru
    _
  %v35 = vld [vmem:[%s0] sm:$0x1]
  %v36 = vld [vmem:[%s1] sm:$0x1]
  %v37 = vld [vmem:[%s2] sm:$0xff]
  %v38 = vld [vmem:[%s2 + $0x8] sm:$0xff]
  %v39 = vld [vmem:[%s2 + $0x10] sm:$0xff]
  %v40 = vld [vmem:[%s2 + $0x18] sm:$0xff]
  %v41 = vld [vmem:[%s3] sm:$0x1]
  %vm42 = vcmask 261120
  %v44 = vsel %vm42, %v36, 0
  %46 = vmatprep.subr.mxu0 0.0
  %47 = vmatpush1.msra.mxu0 0.0
  %48 = vmatprep.subr.mxu0 0.0
  %49 = vmatpush1.msra.mxu0 0.0
  %50 = vmatprep.subr.mxu0 0.0
  %51 = vmatpush1.msra.mxu0 0.0
  %52 = vmatprep.subr.mxu0 0.0
  %53 = vmatpush1.msra.mxu0 0.0
  %54 = vmatprep.subr.mxu0 0.0
  %55 = vmatpush1.msra.mxu0 0.0
  %56 = vmatprep.subr.mxu0 0.0
  %57 = vmatpush1.msra.mxu0 0.0
  %58 = vmatprep.subr.mxu0 0.0
  %59 = vmatpush1.msra.mxu0 0.0
  %60 = vmatprep.subr.mxu0 0.0
  %61 = vmatpush1.msra.mxu0 0.0
  %62 = vmatprep.subr.mxu0 0.0
  %63 = vmatpush1.msra.mxu0 0.0
  %64 = vmatprep.subr.mxu0 0.0
  %65 = vmatpush1.msra.mxu0 0.0
  %66 = vmatprep.subr.mxu0 0.0
  %67 = vmatpush1.msra.mxu0 0.0
  %68 = vmatprep.subr.mxu0 0.0
  %69 = vmatpush1.msra.mxu0 0.0
  %70 = vmatprep.subr.mxu0 0.0
  %71 = vmatpush1.msra.mxu0 %v40
  %72 = vmatprep.subr.mxu0 0.0
  %73 = vmatpush1.msra.mxu0 %v39
  %74 = vmatprep.subr.mxu0 0.0
  %75 = vmatpush1.msra.mxu0 %v38
  %76 = vmatprep.subr.mxu0 0.0
  %77 = vmatpush1.msra.mxu0 %v37
  %78 = vmatprep.subr.mxu0 0.0
  %79 = vmatpush2.msra.mxu0 0.0
  %80 = vmatprep.subr.mxu0 0.0
  %81 = vmatpush2.msra.mxu0 0.0
  %82 = vmatprep.subr.mxu0 0.0
  %83 = vmatpush2.msra.mxu0 0.0
  %84 = vmatprep.subr.mxu0 0.0
  %85 = vmatpush2.msra.mxu0 0.0
  %86 = vmatprep.subr.mxu0 0.0
  %87 = vmatpush2.msra.mxu0 0.0
  %88 = vmatprep.subr.mxu0 0.0
  %89 = vmatpush2.msra.mxu0 0.0
  %90 = vmatprep.subr.mxu0 0.0
  %91 = vmatpush2.msra.mxu0 0.0
  %92 = vmatprep.subr.mxu0 0.0
  %93 = vmatpush2.msra.mxu0 0.0
  %94 = vmatprep.subr.mxu0 0.0
  %95 = vmatpush2.msra.mxu0 0.0
  %96 = vmatprep.subr.mxu0 0.0
  %97 = vmatpush2.msra.mxu0 0.0
  %98 = vmatprep.subr.mxu0 0.0
  %99 = vmatpush2.msra.mxu0 0.0
  %100 = vmatprep.subr.mxu0 0.0
  %101 = vmatpush2.msra.mxu0 0.0
  %102 = vmatprep.subr.mxu0 0.0
  %103 = vmatpush2.msra.mxu0 0.0
  %104 = vmatprep.subr.mxu0 0.0
  %105 = vmatpush2.msra.mxu0 0.0
  %106 = vmatprep.subr.mxu0 0.0
  %107 = vmatpush2.msra.mxu0 0.0
  %108 = vmatprep.subr.mxu0 0.0
  %109 = vmatpush2.msra.mxu0 0.0
  %110 = vmatprep.mubr.f32.mxu0 0.0
  %111 = vmatmul.mubr.f32.gmra.mxu0 %v44
  %v112 = vpop.f32.mrf.mxu0
  %v113 = vadd.f32 %v41, %v112
  %v114 = vpop.f32.mrf.mxu0
  %115 = vdwg.mxu0
  %v116 = vadd.f32 %v35, %v113
  %v117 = vld [vmem:[%s4] sm:$0x1]
  %v118 = vld [vmem:[%s5] sm:$0x1]
  %vm119 = vcmask 253952
  %v120 = vsel %vm119, %v116, 0.0
  %121 = vadd.xlane.f32.xlu0 %v120
  %v122 = vpop.xlane.xlu0 %121
  %v123 = vrcp.pop 32.0
  %v124 = vmul.f32 %v122, %v123
  %v125 = vsub.f32 %v116, %v124
  %v126 = vmul.f32 %v125, %v125
  %v127 = vsel %vm119, %v126, 0.0
  %128 = vadd.xlane.f32.xlu0 %v127
  %v129 = vpop.xlane.xlu0 %128
  %v130 = vmul.f32 %v129, %v123
  %v131 = vadd.f32 %v130, 1e-05
  %v132 = vrsqrt.pop %v131
  %v133 = vmul.f32 %v125, %v132
  %v134 = vmul.f32 %v133, %v117
  %v135 = vadd.f32 %v134, %v118
  %v136 = vld [vmem:[%s6] sm:$0xff]
  %v137 = vld [vmem:[%s6 + $0x8] sm:$0xff]
  %v138 = vld [vmem:[%s6 + $0x10] sm:$0xff]
  %v139 = vld [vmem:[%s6 + $0x18] sm:$0xff]
  %v140 = vld [vmem:[%s7] sm:$0x1]
  %v142 = vsel %vm42, %v135, 0
  %144 = vmatprep.subr.mxu0 0.0
  %145 = vmatpush1.msra.mxu0 0.0
  %146 = vmatprep.subr.mxu0 0.0
  %147 = vmatpush1.msra.mxu0 0.0
  %148 = vmatprep.subr.mxu0 0.0
  %149 = vmatpush1.msra.mxu0 0.0
  %150 = vmatprep.subr.mxu0 0.0
  %151 = vmatpush1.msra.mxu0 0.0
  %152 = vmatprep.subr.mxu0 0.0
  %153 = vmatpush1.msra.mxu0 0.0
  %154 = vmatprep.subr.mxu0 0.0
  %155 = vmatpush1.msra.mxu0 0.0
  %156 = vmatprep.subr.mxu0 0.0
  %157 = vmatpush1.msra.mxu0 0.0
  %158 = vmatprep.subr.mxu0 0.0
  %159 = vmatpush1.msra.mxu0 0.0
  %160 = vmatprep.subr.mxu0 0.0
  %161 = vmatpush1.msra.mxu0 0.0
  %162 = vmatprep.subr.mxu0 0.0
  %163 = vmatpush1.msra.mxu0 0.0
  %164 = vmatprep.subr.mxu0 0.0
  %165 = vmatpush1.msra.mxu0 0.0
  %166 = vmatprep.subr.mxu0 0.0
  %167 = vmatpush1.msra.mxu0 0.0
  %168 = vmatprep.subr.mxu0 0.0
  %169 = vmatpush1.msra.mxu0 %v139
  %170 = vmatprep.subr.mxu0 0.0
  %171 = vmatpush1.msra.mxu0 %v138
  %172 = vmatprep.subr.mxu0 0.0
  %173 = vmatpush1.msra.mxu0 %v137
  %174 = vmatprep.subr.mxu0 0.0
  %175 = vmatpush1.msra.mxu0 %v136
  %176 = vmatprep.subr.mxu0 0.0
  %177 = vmatpush2.msra.mxu0 0.0
  %178 = vmatprep.subr.mxu0 0.0
  %179 = vmatpush2.msra.mxu0 0.0
  %180 = vmatprep.subr.mxu0 0.0
  %181 = vmatpush2.msra.mxu0 0.0
  %182 = vmatprep.subr.mxu0 0.0
  %183 = vmatpush2.msra.mxu0 0.0
  %184 = vmatprep.subr.mxu0 0.0
  %185 = vmatpush2.msra.mxu0 0.0
  %186 = vmatprep.subr.mxu0 0.0
  %187 = vmatpush2.msra.mxu0 0.0
  %188 = vmatprep.subr.mxu0 0.0
  %189 = vmatpush2.msra.mxu0 0.0
  %190 = vmatprep.subr.mxu0 0.0
  %191 = vmatpush2.msra.mxu0 0.0
  %192 = vmatprep.subr.mxu0 0.0
  %193 = vmatpush2.msra.mxu0 0.0
  %194 = vmatprep.subr.mxu0 0.0
  %195 = vmatpush2.msra.mxu0 0.0
  %196 = vmatprep.subr.mxu0 0.0
  %197 = vmatpush2.msra.mxu0 0.0
  %198 = vmatprep.subr.mxu0 0.0
  %199 = vmatpush2.msra.mxu0 0.0
  %200 = vmatprep.subr.mxu0 0.0
  %201 = vmatpush2.msra.mxu0 0.0
  %202 = vmatprep.subr.mxu0 0.0
  %203 = vmatpush2.msra.mxu0 0.0
  %204 = vmatprep.subr.mxu0 0.0
  %205 = vmatpush2.msra.mxu0 0.0
  %206 = vmatprep.subr.mxu0 0.0
  %207 = vmatpush2.msra.mxu0 0.0
  %208 = vmatprep.mubr.f32.mxu0 0.0
  %209 = vmatmul.mubr.f32.gmra.mxu0 %v142
  %v210 = vpop.f32.mrf.mxu0
  %v211 = vadd.f32 %v140, %v210
  %v212 = vpop.f32.mrf.mxu0
  %213 = vdwg.mxu0
  %v214 = vmul.f32 %v211, 0.5
  %v215 = vrcp.pop 1.41421
  %v216 = vmul.f32 %v211, %v215
  %v217 = verf.f32.pop %v216
  %v218 = vadd.f32 %v217, 1.0
  %v219 = vmul.f32 %v214, %v218
  %v220 = vld [vmem:[%s8] sm:$0xff]
  %v221 = vld [vmem:[%s8 + $0x8] sm:$0xff]
  %v222 = vld [vmem:[%s8 + $0x10] sm:$0xff]
  %v223 = vld [vmem:[%s8 + $0x18] sm:$0xff]
  %v224 = vld [vmem:[%s8 + $0x20] sm:$0xff]
  %v225 = vld [vmem:[%s8 + $0x28] sm:$0xff]
  %v226 = vld [vmem:[%s8 + $0x30] sm:$0xff]
  %v227 = vld [vmem:[%s8 + $0x38] sm:$0xff]
  %v228 = vld [vmem:[%s8 + $0x40] sm:$0xff]
  %v229 = vld [vmem:[%s8 + $0x48] sm:$0xff]
  %v230 = vld [vmem:[%s8 + $0x50] sm:$0xff]
  %v231 = vld [vmem:[%s8 + $0x58] sm:$0xff]
  %v232 = vld [vmem:[%s8 + $0x60] sm:$0xff]
  %v233 = vld [vmem:[%s8 + $0x68] sm:$0xff]
  %v234 = vld [vmem:[%s8 + $0x70] sm:$0xff]
  %v235 = vld [vmem:[%s8 + $0x78] sm:$0xff]
  %v236 = vld [vmem:[%s9] sm:$0x1]
  %237 = vmatprep.subr.mxu0 0.0
  %238 = vmatpush1.msra.mxu0 %v235
  %239 = vmatprep.subr.mxu0 0.0
  %240 = vmatpush1.msra.mxu0 %v234
  %241 = vmatprep.subr.mxu0 0.0
  %242 = vmatpush1.msra.mxu0 %v233
  %243 = vmatprep.subr.mxu0 0.0
  %244 = vmatpush1.msra.mxu0 %v232
  %245 = vmatprep.subr.mxu0 0.0
  %246 = vmatpush1.msra.mxu0 %v231
  %247 = vmatprep.subr.mxu0 0.0
  %248 = vmatpush1.msra.mxu0 %v230
  %249 = vmatprep.subr.mxu0 0.0
  %250 = vmatpush1.msra.mxu0 %v229
  %251 = vmatprep.subr.mxu0 0.0
  %252 = vmatpush1.msra.mxu0 %v228
  %253 = vmatprep.subr.mxu0 0.0
  %254 = vmatpush1.msra.mxu0 %v227
  %255 = vmatprep.subr.mxu0 0.0
  %256 = vmatpush1.msra.mxu0 %v226
  %257 = vmatprep.subr.mxu0 0.0
  %258 = vmatpush1.msra.mxu0 %v225
  %259 = vmatprep.subr.mxu0 0.0
  %260 = vmatpush1.msra.mxu0 %v224
  %261 = vmatprep.subr.mxu0 0.0
  %262 = vmatpush1.msra.mxu0 %v223
  %263 = vmatprep.subr.mxu0 0.0
  %264 = vmatpush1.msra.mxu0 %v222
  %265 = vmatprep.subr.mxu0 0.0
  %266 = vmatpush1.msra.mxu0 %v221
  %267 = vmatprep.subr.mxu0 0.0
  %268 = vmatpush1.msra.mxu0 %v220
  %269 = vmatprep.subr.mxu0 0.0
  %270 = vmatpush2.msra.mxu0 0.0
  %271 = vmatprep.subr.mxu0 0.0
  %272 = vmatpush2.msra.mxu0 0.0
  %273 = vmatprep.subr.mxu0 0.0
  %274 = vmatpush2.msra.mxu0 0.0
  %275 = vmatprep.subr.mxu0 0.0
  %276 = vmatpush2.msra.mxu0 0.0
  %277 = vmatprep.subr.mxu0 0.0
  %278 = vmatpush2.msra.mxu0 0.0
  %279 = vmatprep.subr.mxu0 0.0
  %280 = vmatpush2.msra.mxu0 0.0
  %281 = vmatprep.subr.mxu0 0.0
  %282 = vmatpush2.msra.mxu0 0.0
  %283 = vmatprep.subr.mxu0 0.0
  %284 = vmatpush2.msra.mxu0 0.0
  %285 = vmatprep.subr.mxu0 0.0
  %286 = vmatpush2.msra.mxu0 0.0
  %287 = vmatprep.subr.mxu0 0.0
  %288 = vmatpush2.msra.mxu0 0.0
  %289 = vmatprep.subr.mxu0 0.0
  %290 = vmatpush2.msra.mxu0 0.0
  %291 = vmatprep.subr.mxu0 0.0
  %292 = vmatpush2.msra.mxu0 0.0
  %293 = vmatprep.subr.mxu0 0.0
  %294 = vmatpush2.msra.mxu0 0.0
  %295 = vmatprep.subr.mxu0 0.0
  %296 = vmatpush2.msra.mxu0 0.0
  %297 = vmatprep.subr.mxu0 0.0
  %298 = vmatpush2.msra.mxu0 0.0
  %299 = vmatprep.subr.mxu0 0.0
  %300 = vmatpush2.msra.mxu0 0.0
  %301 = vmatprep.mubr.f32.mxu0 0.0
  %302 = vmatmul.mubr.f32.gmra.mxu0 %v219
  %v303 = vpop.f32.mrf.mxu0
  %v304 = vadd.f32 %v236, %v303
  %v305 = vpop.f32.mrf.mxu0
  %306 = vdwg.mxu0
  %v307 = vadd.f32 %v116, %v304
  %308 = vst.msk [vmem:[%s10] sm:$0x1] %vm119, %v307
  // Predicated region
  $region42: #{gpt_forward.8} parent=0 // pred_check
    _
  $region43: #{gpt_forward.8} parent=0 // pred_check_branch
    %310 = sbr.rel (0) target = $region45
  $region44: #{gpt_forward.8} parent=0 // pred_region
    _
  $region45: #{gpt_forward.8} parent=0 // pred_fallthru
    _
  // Predicated region
  $region46: #{gpt_forward.8} parent=0 // pred_check
    _
  $region47: #{gpt_forward.8} parent=0 // pred_check_branch
    %312 = sbr.rel (0) target = $region49
  $region48: #{gpt_forward.8} parent=0 // pred_region
    _
  $region49: #{gpt_forward.8} parent=0 // pred_fallthru
    _

// kernel: gpt_forward.5
$region0: #{gpt_forward.5}
  #allocation0 [shape = 'u32[]', space=smem, size = 0x4, offset = 0x4, fixed_abs, tag = 'smem constant byte address 0x4 - core index']
  #allocation1 [shape = 'u32[144,128]{1,0:T(1,128)}', space=vmem, size = 0x12000, scoped, tag = 'internal scratch']
  #allocation2 [shape = 'f32[72,8]{1,0:T(8,128)}', space=vmem, size = 0x9000, scoped, tag = 'scratch operand']
  #allocation3 [shape = 'f32[72,8]{1,0:T(8,128)}', space=vmem, size = 0x9000, scoped, tag = 'scratch operand']
  #allocation4 [shape = 'f32[72,8]{1,0:T(8,128)}', space=vmem, size = 0x9000, scoped, tag = 'scratch operand']
  %s0 = inlined_call_operand.vmem [shape: f32[8,32], index: 0, kind: input, shape index: {}]
  %s1 = inlined_call_operand.vmem [shape: f32[64,8], index: 1, kind: input, shape index: {}]
  %s2 = inlined_call_operand.vmem [shape: f32[64,8], index: 2, kind: input, shape index: {}]
  %s3 = inlined_call_operand.vmem [shape: f32[64,8], index: 3, kind: input, shape index: {}]
  %s4 = inlined_call_operand.vmem [shape: f32[1,32], index: 4, kind: input, shape index: {}]
  %s5 = inlined_call_operand.vmem [shape: f32[1,32], index: 5, kind: input, shape index: {}]
  %s6 = inlined_call_operand.vmem [shape: f32[32,24], index: 6, kind: input, shape index: {}]
  %s7 = inlined_call_operand.vmem [shape: f32[1,24], index: 7, kind: input, shape index: {}]
  %s8 = inlined_call_operand.vmem [shape: f32[72,8], index: 8, kind: output, shape index: {}]
  %s9 = sld [smem:[#allocation0]]
  $region42: #{gpt_forward.5} parent=0
    _
  %s11 = ssub.s32 1, %s9
  %s12 = scalar_select 0, %s11, %s9
  // Predicated region
  $region2: #{gpt_forward.5} parent=0 // pred_check
    _
  $region3: #{gpt_forward.5} parent=0 // pred_check_branch
    %14 = sbr.rel (0) target = $region5
  $region4: #{gpt_forward.5} parent=0 // pred_region
    _
  $region5: #{gpt_forward.5} parent=0 // pred_fallthru
    _
  // Predicated region
  $region6: #{gpt_forward.5} parent=0 // pred_check
    _
  $region7: #{gpt_forward.5} parent=0 // pred_check_branch
    %16 = sbr.rel (0) target = $region9
  $region8: #{gpt_forward.5} parent=0 // pred_region
    _
  $region9: #{gpt_forward.5} parent=0 // pred_fallthru
    _
  // Predicated region
  $region10: #{gpt_forward.5} parent=0 // pred_check
    _
  $region11: #{gpt_forward.5} parent=0 // pred_check_branch
    %18 = sbr.rel (0) target = $region13
  $region12: #{gpt_forward.5} parent=0 // pred_region
    _
  $region13: #{gpt_forward.5} parent=0 // pred_fallthru
    _
  // Predicated region
  $region14: #{gpt_forward.5} parent=0 // pred_check
    _
  $region15: #{gpt_forward.5} parent=0 // pred_check_branch
    %20 = sbr.rel (0) target = $region17
  $region16: #{gpt_forward.5} parent=0 // pred_region
    _
  $region17: #{gpt_forward.5} parent=0 // pred_fallthru
    _
  // Predicated region
  $region18: #{gpt_forward.5} parent=0 // pred_check
    _
  $region19: #{gpt_forward.5} parent=0 // pred_check_branch
    %22 = sbr.rel (0) target = $region21
  $region20: #{gpt_forward.5} parent=0 // pred_region
    _
  $region21: #{gpt_forward.5} parent=0 // pred_fallthru
    _
  // Predicated region
  $region22: #{gpt_forward.5} parent=0 // pred_check
    _
  $region23: #{gpt_forward.5} parent=0 // pred_check_branch
    %24 = sbr.rel (0) target = $region25
  $region24: #{gpt_forward.5} parent=0 // pred_region
    _
  $region25: #{gpt_forward.5} parent=0 // pred_fallthru
    _
  // Predicated region
  $region26: #{gpt_forward.5} parent=0 // pred_check
    _
  $region27: #{gpt_forward.5} parent=0 // pred_check_branch
    %26 = sbr.rel (0) target = $region29
  $region28: #{gpt_forward.5} parent=0 // pred_region
    _
  $region29: #{gpt_forward.5} parent=0 // pred_fallthru
    _
  // Predicated region
  $region30: #{gpt_forward.5} parent=0 // pred_check
    _
  $region31: #{gpt_forward.5} parent=0 // pred_check_branch
    %28 = sbr.rel (0) target = $region33
  $region32: #{gpt_forward.5} parent=0 // pred_region
    _
  $region33: #{gpt_forward.5} parent=0 // pred_fallthru
    _
  %v29 = vld [vmem:[%s0] sm:$0xff]
  %v30 = vld [vmem:[%s4] sm:$0x1]
  %v31 = vld [vmem:[%s5] sm:$0x1]
  %vm32 = vcmask 261120
  %v33 = vsel %vm32, %v29, 0.0
  %34 = vadd.xlane.f32.xlu0 %v33
  %v35 = vpop.xlane.xlu0 %34
  %v36 = vrcp.pop 32.0
  %v37 = vmul.f32 %v35, %v36
  %v38 = vsub.f32 %v29, %v37
  %v39 = vmul.f32 %v38, %v38
  %v40 = vsel %vm32, %v39, 0.0
  %41 = vadd.xlane.f32.xlu0 %v40
  %v42 = vpop.xlane.xlu0 %41
  %v43 = vmul.f32 %v42, %v36
  %v44 = vadd.f32 %v43, 1e-05
  %v45 = vrsqrt.pop %v44
  %v46 = vmul.f32 %v38, %v45
  %v48 = vlaneseq
  %v49 = vshrl.u32 %v48, 7
  %v50 = vsub.s32 0, %v49
  %v51 = vrot.slane %v30, %v50
  %v53 = vmul.f32 %v46, %v51
  %v55 = vlaneseq
  %v56 = vshrl.u32 %v55, 7
  %v57 = vsub.s32 0, %v56
  %v58 = vrot.slane %v31, %v57
  %v60 = vadd.f32 %v53, %v58
  %v61 = vld [vmem:[%s6] sm:$0xff]
  %v62 = vld [vmem:[%s6 + $0x8] sm:$0xff]
  %v63 = vld [vmem:[%s6 + $0x10] sm:$0xff]
  %v64 = vld [vmem:[%s6 + $0x18] sm:$0xff]
  %v65 = vld [vmem:[%s7] sm:$0x1]
  %v67 = vlaneseq
  %v68 = vshrl.u32 %v67, 7
  %v69 = vsub.s32 0, %v68
  %v70 = vrot.slane %v65, %v69
  %v73 = vsel %vm32, %v60, 0
  %75 = vmatprep.subr.mxu0 0.0
  %76 = vmatpush1.msra.mxu0 0.0
  %77 = vmatprep.subr.mxu0 0.0
  %78 = vmatpush1.msra.mxu0 0.0
  %79 = vmatprep.subr.mxu0 0.0
  %80 = vmatpush1.msra.mxu0 0.0
  %81 = vmatprep.subr.mxu0 0.0
  %82 = vmatpush1.msra.mxu0 0.0
  %83 = vmatprep.subr.mxu0 0.0
  %84 = vmatpush1.msra.mxu0 0.0
  %85 = vmatprep.subr.mxu0 0.0
  %86 = vmatpush1.msra.mxu0 0.0
  %87 = vmatprep.subr.mxu0 0.0
  %88 = vmatpush1.msra.mxu0 0.0
  %89 = vmatprep.subr.mxu0 0.0
  %90 = vmatpush1.msra.mxu0 0.0
  %91 = vmatprep.subr.mxu0 0.0
  %92 = vmatpush1.msra.mxu0 0.0
  %93 = vmatprep.subr.mxu0 0.0
  %94 = vmatpush1.msra.mxu0 0.0
  %95 = vmatprep.subr.mxu0 0.0
  %96 = vmatpush1.msra.mxu0 0.0
  %97 = vmatprep.subr.mxu0 0.0
  %98 = vmatpush1.msra.mxu0 0.0
  %99 = vmatprep.subr.mxu0 0.0
  %100 = vmatpush1.msra.mxu0 %v64
  %101 = vmatprep.subr.mxu0 0.0
  %102 = vmatpush1.msra.mxu0 %v63
  %103 = vmatprep.subr.mxu0 0.0
  %104 = vmatpush1.msra.mxu0 %v62
  %105 = vmatprep.subr.mxu0 0.0
  %106 = vmatpush1.msra.mxu0 %v61
  %107 = vmatprep.subr.mxu0 0.0
  %108 = vmatpush2.msra.mxu0 0.0
  %109 = vmatprep.subr.mxu0 0.0
  %110 = vmatpush2.msra.mxu0 0.0
  %111 = vmatprep.subr.mxu0 0.0
  %112 = vmatpush2.msra.mxu0 0.0
  %113 = vmatprep.subr.mxu0 0.0
  %114 = vmatpush2.msra.mxu0 0.0
  %115 = vmatprep.subr.mxu0 0.0
  %116 = vmatpush2.msra.mxu0 0.0
  %117 = vmatprep.subr.mxu0 0.0
  %118 = vmatpush2.msra.mxu0 0.0
  %119 = vmatprep.subr.mxu0 0.0
  %120 = vmatpush2.msra.mxu0 0.0
  %121 = vmatprep.subr.mxu0 0.0
  %122 = vmatpush2.msra.mxu0 0.0
  %123 = vmatprep.subr.mxu0 0.0
  %124 = vmatpush2.msra.mxu0 0.0
  %125 = vmatprep.subr.mxu0 0.0
  %126 = vmatpush2.msra.mxu0 0.0
  %127 = vmatprep.subr.mxu0 0.0
  %128 = vmatpush2.msra.mxu0 0.0
  %129 = vmatprep.subr.mxu0 0.0
  %130 = vmatpush2.msra.mxu0 0.0
  %131 = vmatprep.subr.mxu0 0.0
  %132 = vmatpush2.msra.mxu0 0.0
  %133 = vmatprep.subr.mxu0 0.0
  %134 = vmatpush2.msra.mxu0 0.0
  %135 = vmatprep.subr.mxu0 0.0
  %136 = vmatpush2.msra.mxu0 0.0
  %137 = vmatprep.subr.mxu0 0.0
  %138 = vmatpush2.msra.mxu0 0.0
  %139 = vmatprep.mubr.f32.mxu0 0.0
  %140 = vmatmul.mubr.f32.gmra.mxu0 %v73
  %v141 = vpop.f32.mrf.mxu0
  %v142 = vadd.f32 %v70, %v141
  %v143 = vpop.f32.mrf.mxu0
  %144 = vdwg.mxu0
  %v145 = vld [vmem:[%s1] sm:$0xff]
  %v146 = vld [vmem:[%s1 + $0x8] sm:$0xff]
  %v147 = vld [vmem:[%s1 + $0x10] sm:$0xff]
  %v148 = vld [vmem:[%s1 + $0x18] sm:$0xff]
  %v149 = vld [vmem:[%s1 + $0x20] sm:$0xff]
  %v150 = vld [vmem:[%s1 + $0x28] sm:$0xff]
  %v151 = vld [vmem:[%s1 + $0x30] sm:$0xff]
  %v152 = vld [vmem:[%s1 + $0x38] sm:$0xff]
  %vm153 = vcmask 64512
  %154 = vst.msk [vmem:[#allocation2] sm:$0xff] %vm153, %v145
  %155 = vst.msk [vmem:[#allocation2 + $0x8] sm:$0xff] %vm153, %v146
  %156 = vst.msk [vmem:[#allocation2 + $0x10] sm:$0xff] %vm153, %v147
  %157 = vst.msk [vmem:[#allocation2 + $0x18] sm:$0xff] %vm153, %v148
  %158 = vst.msk [vmem:[#allocation2 + $0x20] sm:$0xff] %vm153, %v149
  %159 = vst.msk [vmem:[#allocation2 + $0x28] sm:$0xff] %vm153, %v150
  %160 = vst.msk [vmem:[#allocation2 + $0x30] sm:$0xff] %vm153, %v151
  %161 = vst.msk [vmem:[#allocation2 + $0x38] sm:$0xff] %vm153, %v152
  %v162 = vld [vmem:[%s2] sm:$0xff]
  %v163 = vld [vmem:[%s2 + $0x8] sm:$0xff]
  %v164 = vld [vmem:[%s2 + $0x10] sm:$0xff]
  %v165 = vld [vmem:[%s2 + $0x18] sm:$0xff]
  %v166 = vld [vmem:[%s2 + $0x20] sm:$0xff]
  %v167 = vld [vmem:[%s2 + $0x28] sm:$0xff]
  %v168 = vld [vmem:[%s2 + $0x30] sm:$0xff]
  %v169 = vld [vmem:[%s2 + $0x38] sm:$0xff]
  %170 = vst.msk [vmem:[#allocation3] sm:$0xff] %vm153, %v162
  %171 = vst.msk [vmem:[#allocation3 + $0x8] sm:$0xff] %vm153, %v163
  %172 = vst.msk [vmem:[#allocation3 + $0x10] sm:$0xff] %vm153, %v164
  %173 = vst.msk [vmem:[#allocation3 + $0x18] sm:$0xff] %vm153, %v165
  %174 = vst.msk [vmem:[#allocation3 + $0x20] sm:$0xff] %vm153, %v166
  %175 = vst.msk [vmem:[#allocation3 + $0x28] sm:$0xff] %vm153, %v167
  %176 = vst.msk [vmem:[#allocation3 + $0x30] sm:$0xff] %vm153, %v168
  %177 = vst.msk [vmem:[#allocation3 + $0x38] sm:$0xff] %vm153, %v169
  %v178 = vld [vmem:[%s3] sm:$0xff]
  %v179 = vld [vmem:[%s3 + $0x8] sm:$0xff]
  %v180 = vld [vmem:[%s3 + $0x10] sm:$0xff]
  %v181 = vld [vmem:[%s3 + $0x18] sm:$0xff]
  %v182 = vld [vmem:[%s3 + $0x20] sm:$0xff]
  %v183 = vld [vmem:[%s3 + $0x28] sm:$0xff]
  %v184 = vld [vmem:[%s3 + $0x30] sm:$0xff]
  %v185 = vld [vmem:[%s3 + $0x38] sm:$0xff]
  %186 = vst.msk [vmem:[#allocation4] sm:$0xff] %vm153, %v178
  %187 = vst.msk [vmem:[#allocation4 + $0x8] sm:$0xff] %vm153, %v179
  %188 = vst.msk [vmem:[#allocation4 + $0x10] sm:$0xff] %vm153, %v180
  %189 = vst.msk [vmem:[#allocation4 + $0x18] sm:$0xff] %vm153, %v181
  %190 = vst.msk [vmem:[#allocation4 + $0x20] sm:$0xff] %vm153, %v182
  %191 = vst.msk [vmem:[#allocation4 + $0x28] sm:$0xff] %vm153, %v183
  %192 = vst.msk [vmem:[#allocation4 + $0x30] sm:$0xff] %vm153, %v184
  %193 = vst.msk [vmem:[#allocation4 + $0x38] sm:$0xff] %vm153, %v185
  %194 = vst.msk [vmem:[#allocation2 + $0x40] sm:$0xff] %vm153, %v142
  %196 = vrot.lane.b32.xlu0 %v142, 120
  %v197 = vpop.permute.xlu0 %196
  %199 = vst.msk [vmem:[#allocation3 + $0x40] sm:$0xff] %vm153, %v197
  %200 = vrot.lane.b32.xlu0 %v142, 112
  %v201 = vpop.permute.xlu0 %200
  %203 = vst.msk [vmem:[#allocation4 + $0x40] sm:$0xff] %vm153, %v201
  %v204 = vld [vmem:[#allocation2] sm:$0xff]
  %v205 = vld [vmem:[#allocation2 + $0x8] sm:$0xff]
  %v206 = vld [vmem:[#allocation2 + $0x10] sm:$0xff]
  %v207 = vld [vmem:[#allocation2 + $0x18] sm:$0xff]
  %v208 = vld [vmem:[#allocation2 + $0x20] sm:$0xff]
  %v209 = vld [vmem:[#allocation2 + $0x28] sm:$0xff]
  %v210 = vld [vmem:[#allocation2 + $0x30] sm:$0xff]
  %v211 = vld [vmem:[#allocation2 + $0x38] sm:$0xff]
  %v212 = vld [vmem:[#allocation2 + $0x40] sm:$0xff]
  %v213 = vld [vmem:[#allocation3] sm:$0xff]
  %v214 = vld [vmem:[#allocation3 + $0x8] sm:$0xff]
  %v215 = vld [vmem:[#allocation3 + $0x10] sm:$0xff]
  %v216 = vld [vmem:[#allocation3 + $0x18] sm:$0xff]
  %v217 = vld [vmem:[#allocation3 + $0x20] sm:$0xff]
  %v218 = vld [vmem:[#allocation3 + $0x28] sm:$0xff]
  %v219 = vld [vmem:[#allocation3 + $0x30] sm:$0xff]
  %v220 = vld [vmem:[#allocation3 + $0x38] sm:$0xff]
  %v221 = vld [vmem:[#allocation3 + $0x40] sm:$0xff]
  %v222 = vld [vmem:[#allocation4] sm:$0xff]
  %v223 = vld [vmem:[#allocation4 + $0x8] sm:$0xff]
  %v224 = vld [vmem:[#allocation4 + $0x10] sm:$0xff]
  %v225 = vld [vmem:[#allocation4 + $0x18] sm:$0xff]
  %v226 = vld [vmem:[#allocation4 + $0x20] sm:$0xff]
  %v227 = vld [vmem:[#allocation4 + $0x28] sm:$0xff]
  %v228 = vld [vmem:[#allocation4 + $0x30] sm:$0xff]
  %v229 = vld [vmem:[#allocation4 + $0x38] sm:$0xff]
  %v230 = vld [vmem:[#allocation4 + $0x40] sm:$0xff]
  %v232 = vsel %vm153, %v204, 0
  %v235 = vsel %vm153, %v205, 0
  %v238 = vsel %vm153, %v206, 0
  %v241 = vsel %vm153, %v207, 0
  %v244 = vsel %vm153, %v208, 0
  %v247 = vsel %vm153, %v209, 0
  %v250 = vsel %vm153, %v210, 0
  %v253 = vsel %vm153, %v211, 0
  %v256 = vsel %vm153, %v212, 0
  %v259 = vsel %vm153, %v213, 0
  %v262 = vsel %vm153, %v214, 0
  %v265 = vsel %vm153, %v215, 0
  %v268 = vsel %vm153, %v216, 0
  %v271 = vsel %vm153, %v217, 0
  %v274 = vsel %vm153, %v218, 0
  %v277 = vsel %vm153, %v219, 0
  %v280 = vsel %vm153, %v220, 0
  %v283 = vsel %vm153, %v221, 0
  %285 = vmatprep.subr.mxu0 0.0
  %286 = vmatpush1.xpose.msra.mxu0 0.0
  %287 = vmatprep.subr.mxu0 0.0
  %288 = vmatpush1.xpose.msra.mxu0 0.0
  %289 = vmatprep.subr.mxu0 0.0
  %290 = vmatpush1.xpose.msra.mxu0 0.0
  %291 = vmatprep.subr.mxu0 0.0
  %292 = vmatpush1.xpose.msra.mxu0 0.0
  %293 = vmatprep.subr.mxu0 0.0
  %294 = vmatpush1.xpose.msra.mxu0 0.0
  %295 = vmatprep.subr.mxu0 0.0
  %296 = vmatpush1.xpose.msra.mxu0 0.0
  %297 = vmatprep.subr.mxu0 0.0
  %298 = vmatpush1.xpose.msra.mxu0 0.0
  %299 = vmatprep.subr.mxu0 0.0
  %300 = vmatpush1.xpose.msra.mxu0 %v283
  %301 = vmatprep.subr.mxu0 0.0
  %302 = vmatpush1.xpose.msra.mxu0 %v280
  %303 = vmatprep.subr.mxu0 0.0
  %304 = vmatpush1.xpose.msra.mxu0 %v277
  %305 = vmatprep.subr.mxu0 0.0
  %306 = vmatpush1.xpose.msra.mxu0 %v274
  %307 = vmatprep.subr.mxu0 0.0
  %308 = vmatpush1.xpose.msra.mxu0 %v271
  %309 = vmatprep.subr.mxu0 0.0
  %310 = vmatpush1.xpose.msra.mxu0 %v268
  %311 = vmatprep.subr.mxu0 0.0
  %312 = vmatpush1.xpose.msra.mxu0 %v265
  %313 = vmatprep.subr.mxu0 0.0
  %314 = vmatpush1.xpose.msra.mxu0 %v262
  %315 = vmatprep.subr.mxu0 0.0
  %316 = vmatpush1.xpose.msra.mxu0 %v259
  %317 = vmatprep.subr.mxu0 0.0
  %318 = vmatpush2.xpose.msra.mxu0 0.0
  %319 = vmatprep.subr.mxu0 0.0
  %320 = vmatpush2.xpose.msra.mxu0 0.0
  %321 = vmatprep.subr.mxu0 0.0
  %322 = vmatpush2.xpose.msra.mxu0 0.0
  %323 = vmatprep.subr.mxu0 0.0
  %324 = vmatpush2.xpose.msra.mxu0 0.0
  %325 = vmatprep.subr.mxu0 0.0
  %326 = vmatpush2.xpose.msra.mxu0 0.0
  %327 = vmatprep.subr.mxu0 0.0
  %328 = vmatpush2.xpose.msra.mxu0 0.0
  %329 = vmatprep.subr.mxu0 0.0
  %330 = vmatpush2.xpose.msra.mxu0 0.0
  %331 = vmatprep.subr.mxu0 0.0
  %332 = vmatpush2.xpose.msra.mxu0 0.0
  %333 = vmatprep.subr.mxu0 0.0
  %334 = vmatpush2.xpose.msra.mxu0 0.0
  %335 = vmatprep.subr.mxu0 0.0
  %336 = vmatpush2.xpose.msra.mxu0 0.0
  %337 = vmatprep.subr.mxu0 0.0
  %338 = vmatpush2.xpose.msra.mxu0 0.0
  %339 = vmatprep.subr.mxu0 0.0
  %340 = vmatpush2.xpose.msra.mxu0 0.0
  %341 = vmatprep.subr.mxu0 0.0
  %342 = vmatpush2.xpose.msra.mxu0 0.0
  %343 = vmatprep.subr.mxu0 0.0
  %344 = vmatpush2.xpose.msra.mxu0 0.0
  %345 = vmatprep.subr.mxu0 0.0
  %346 = vmatpush2.xpose.msra.mxu0 0.0
  %347 = vmatprep.subr.mxu0 0.0
  %348 = vmatpush2.xpose.msra.mxu0 0.0
  %349 = vmatprep.mubr.f32.mxu0 0.0
  %350 = vmatmul.mubr.f32.gmra.mxu0 %v232
  %v351 = vpop.f32.mrf.mxu0
  %v352 = vadd.f32 0.0, %v351
  %v353 = vpop.f32.mrf.mxu0
  %354 = vmatprep.mubr.f32.mxu0 0.0
  %355 = vmatmul.mubr.f32.gmra.mxu0 %v235
  %v356 = vpop.f32.mrf.mxu0
  %v357 = vadd.f32 0.0, %v356
  %v358 = vpop.f32.mrf.mxu0
  %359 = vmatprep.mubr.f32.mxu0 0.0
  %360 = vmatmul.mubr.f32.gmra.mxu0 %v238
  %v361 = vpop.f32.mrf.mxu0
  %v362 = vadd.f32 0.0, %v361
  %v363 = vpop.f32.mrf.mxu0
  %364 = vmatprep.mubr.f32.mxu0 0.0
  %365 = vmatmul.mubr.f32.gmra.mxu0 %v241
  %v366 = vpop.f32.mrf.mxu0
  %v367 = vadd.f32 0.0, %v366
  %v368 = vpop.f32.mrf.mxu0
  %369 = vmatprep.mubr.f32.mxu0 0.0
  %370 = vmatmul.mubr.f32.gmra.mxu0 %v244
  %v371 = vpop.f32.mrf.mxu0
  %v372 = vadd.f32 0.0, %v371
  %v373 = vpop.f32.mrf.mxu0
  %374 = vmatprep.mubr.f32.mxu0 0.0
  %375 = vmatmul.mubr.f32.gmra.mxu0 %v247
  %v376 = vpop.f32.mrf.mxu0
  %v377 = vadd.f32 0.0, %v376
  %v378 = vpop.f32.mrf.mxu0
  %379 = vmatprep.mubr.f32.mxu0 0.0
  %380 = vmatmul.mubr.f32.gmra.mxu0 %v250
  %v381 = vpop.f32.mrf.mxu0
  %v382 = vadd.f32 0.0, %v381
  %v383 = vpop.f32.mrf.mxu0
  %384 = vmatprep.mubr.f32.mxu0 0.0
  %385 = vmatmul.mubr.f32.gmra.mxu0 %v253
  %v386 = vpop.f32.mrf.mxu0
  %v387 = vadd.f32 0.0, %v386
  %v388 = vpop.f32.mrf.mxu0
  %389 = vmatprep.mubr.f32.mxu0 0.0
  %390 = vmatmul.mubr.f32.gmra.mxu0 %v256
  %v391 = vpop.f32.mrf.mxu0
  %v392 = vadd.f32 0.0, %v391
  %v393 = vpop.f32.mrf.mxu0
  %394 = vdwg.mxu0
  %v395 = vmul.f32 %v352, 0.35355338
  %v396 = vmul.f32 %v357, 0.35355338
  %v397 = vmul.f32 %v362, 0.35355338
  %v398 = vmul.f32 %v367, 0.35355338
  %v399 = vmul.f32 %v372, 0.35355338
  %v400 = vmul.f32 %v377, 0.35355338
  %v401 = vmul.f32 %v382, 0.35355338
  %v402 = vmul.f32 %v387, 0.35355338
  %v403 = vmul.f32 %v392, 0.35355338
  %vm404 = vcmask 588800
  %v405 = vsel %vm404, %v395, -inf
  %406 = vmax.xlane.f32.xlu0 %v405
  %v407 = vpop.xlane.xlu0 %406
  %v408 = vsel %vm404, %v396, -inf
  %409 = vmax.xlane.f32.xlu0 %v408
  %v410 = vpop.xlane.xlu0 %409
  %v411 = vsel %vm404, %v397, -inf
  %412 = vmax.xlane.f32.xlu0 %v411
  %v413 = vpop.xlane.xlu0 %412
  %v414 = vsel %vm404, %v398, -inf
  %415 = vmax.xlane.f32.xlu0 %v414
  %v416 = vpop.xlane.xlu0 %415
  %v417 = vsel %vm404, %v399, -inf
  %418 = vmax.xlane.f32.xlu0 %v417
  %v419 = vpop.xlane.xlu0 %418
  %v420 = vsel %vm404, %v400, -inf
  %421 = vmax.xlane.f32.xlu0 %v420
  %v422 = vpop.xlane.xlu0 %421
  %v423 = vsel %vm404, %v401, -inf
  %424 = vmax.xlane.f32.xlu0 %v423
  %v425 = vpop.xlane.xlu0 %424
  %v426 = vsel %vm404, %v402, -inf
  %427 = vmax.xlane.f32.xlu0 %v426
  %v428 = vpop.xlane.xlu0 %427
  %v429 = vsel %vm404, %v403, -inf
  %430 = vmax.xlane.f32.xlu0 %v429
  %v431 = vpop.xlane.xlu0 %430
  %v432 = vsub.f32 %v395, %v407
  %v433 = vsub.f32 %v396, %v410
  %v434 = vsub.f32 %v397, %v413
  %v435 = vsub.f32 %v398, %v416
  %v436 = vsub.f32 %v399, %v419
  %v437 = vsub.f32 %v400, %v422
  %v438 = vsub.f32 %v401, %v425
  %v439 = vsub.f32 %v402, %v428
  %v440 = vsub.f32 %v403, %v431
  %v441 = vmul.f32 %v432, 1.442695
  %v442 = vpow.pop %v441
  %v443 = vmul.f32 %v433, 1.442695
  %v444 = vpow.pop %v443
  %v445 = vmul.f32 %v434, 1.442695
  %v446 = vpow.pop %v445
  %v447 = vmul.f32 %v435, 1.442695
  %v448 = vpow.pop %v447
  %v449 = vmul.f32 %v436, 1.442695
  %v450 = vpow.pop %v449
  %v451 = vmul.f32 %v437, 1.442695
  %v452 = vpow.pop %v451
  %v453 = vmul.f32 %v438, 1.442695
  %v454 = vpow.pop %v453
  %v455 = vmul.f32 %v439, 1.442695
  %v456 = vpow.pop %v455
  %v457 = vmul.f32 %v440, 1.442695
  %v458 = vpow.pop %v457
  %v459 = vsel %vm404, %v442, 0.0
  %460 = vadd.xlane.f32.xlu0 %v459
  %v461 = vpop.xlane.xlu0 %460
  %v462 = vsel %vm404, %v444, 0.0
  %463 = vadd.xlane.f32.xlu0 %v462
  %v464 = vpop.xlane.xlu0 %463
  %v465 = vsel %vm404, %v446, 0.0
  %466 = vadd.xlane.f32.xlu0 %v465
  %v467 = vpop.xlane.xlu0 %466
  %v468 = vsel %vm404, %v448, 0.0
  %469 = vadd.xlane.f32.xlu0 %v468
  %v470 = vpop.xlane.xlu0 %469
  %v471 = vsel %vm404, %v450, 0.0
  %472 = vadd.xlane.f32.xlu0 %v471
  %v473 = vpop.xlane.xlu0 %472
  %v474 = vsel %vm404, %v452, 0.0
  %475 = vadd.xlane.f32.xlu0 %v474
  %v476 = vpop.xlane.xlu0 %475
  %v477 = vsel %vm404, %v454, 0.0
  %478 = vadd.xlane.f32.xlu0 %v477
  %v479 = vpop.xlane.xlu0 %478
  %v480 = vsel %vm404, %v456, 0.0
  %481 = vadd.xlane.f32.xlu0 %v480
  %v482 = vpop.xlane.xlu0 %481
  %v483 = vsel %vm404, %v458, 0.0
  %484 = vadd.xlane.f32.xlu0 %v483
  %v485 = vpop.xlane.xlu0 %484
  %v486 = vrcp.pop %v461
  %v487 = vmul.f32 %v442, %v486
  %v488 = vrcp.pop %v464
  %v489 = vmul.f32 %v444, %v488
  %v490 = vrcp.pop %v467
  %v491 = vmul.f32 %v446, %v490
  %v492 = vrcp.pop %v470
  %v493 = vmul.f32 %v448, %v492
  %v494 = vrcp.pop %v473
  %v495 = vmul.f32 %v450, %v494
  %v496 = vrcp.pop %v476
  %v497 = vmul.f32 %v452, %v496
  %v498 = vrcp.pop %v479
  %v499 = vmul.f32 %v454, %v498
  %v500 = vrcp.pop %v482
  %v501 = vmul.f32 %v456, %v500
  %v502 = vrcp.pop %v485
  %v503 = vmul.f32 %v458, %v502
  %v505 = vsel %vm404, %v487, 0
  %v508 = vsel %vm404, %v489, 0
  %v511 = vsel %vm404, %v491, 0
  %v514 = vsel %vm404, %v493, 0
  %v517 = vsel %vm404, %v495, 0
  %v520 = vsel %vm404, %v497, 0
  %v523 = vsel %vm404, %v499, 0
  %v526 = vsel %vm404, %v501, 0
  %v529 = vsel %vm404, %v503, 0
  %531 = vmatprep.subr.mxu0 0.0
  %532 = vmatpush1.msra.mxu0 0.0
  %533 = vmatprep.subr.mxu0 0.0
  %534 = vmatpush1.msra.mxu0 0.0
  %535 = vmatprep.subr.mxu0 0.0
  %536 = vmatpush1.msra.mxu0 0.0
  %537 = vmatprep.subr.mxu0 0.0
  %538 = vmatpush1.msra.mxu0 0.0
  %539 = vmatprep.subr.mxu0 0.0
  %540 = vmatpush1.msra.mxu0 0.0
  %541 = vmatprep.subr.mxu0 0.0
  %542 = vmatpush1.msra.mxu0 0.0
  %543 = vmatprep.subr.mxu0 0.0
  %544 = vmatpush1.msra.mxu0 0.0
  %545 = vmatprep.subr.mxu0 0.0
  %546 = vmatpush1.msra.mxu0 %v230
  %547 = vmatprep.subr.mxu0 0.0
  %548 = vmatpush1.msra.mxu0 %v229
  %549 = vmatprep.subr.mxu0 0.0
  %550 = vmatpush1.msra.mxu0 %v228
  %551 = vmatprep.subr.mxu0 0.0
  %552 = vmatpush1.msra.mxu0 %v227
  %553 = vmatprep.subr.mxu0 0.0
  %554 = vmatpush1.msra.mxu0 %v226
  %555 = vmatprep.subr.mxu0 0.0
  %556 = vmatpush1.msra.mxu0 %v225
  %557 = vmatprep.subr.mxu0 0.0
  %558 = vmatpush1.msra.mxu0 %v224
  %559 = vmatprep.subr.mxu0 0.0
  %560 = vmatpush1.msra.mxu0 %v223
  %561 = vmatprep.subr.mxu0 0.0
  %562 = vmatpush1.msra.mxu0 %v222
  %563 = vmatprep.subr.mxu0 0.0
  %564 = vmatpush2.msra.mxu0 0.0
  %565 = vmatprep.subr.mxu0 0.0
  %566 = vmatpush2.msra.mxu0 0.0
  %567 = vmatprep.subr.mxu0 0.0
  %568 = vmatpush2.msra.mxu0 0.0
  %569 = vmatprep.subr.mxu0 0.0
  %570 = vmatpush2.msra.mxu0 0.0
  %571 = vmatprep.subr.mxu0 0.0
  %572 = vmatpush2.msra.mxu0 0.0
  %573 = vmatprep.subr.mxu0 0.0
  %574 = vmatpush2.msra.mxu0 0.0
  %575 = vmatprep.subr.mxu0 0.0
  %576 = vmatpush2.msra.mxu0 0.0
  %577 = vmatprep.subr.mxu0 0.0
  %578 = vmatpush2.msra.mxu0 0.0
  %579 = vmatprep.subr.mxu0 0.0
  %580 = vmatpush2.msra.mxu0 0.0
  %581 = vmatprep.subr.mxu0 0.0
  %582 = vmatpush2.msra.mxu0 0.0
  %583 = vmatprep.subr.mxu0 0.0
  %584 = vmatpush2.msra.mxu0 0.0
  %585 = vmatprep.subr.mxu0 0.0
  %586 = vmatpush2.msra.mxu0 0.0
  %587 = vmatprep.subr.mxu0 0.0
  %588 = vmatpush2.msra.mxu0 0.0
  %589 = vmatprep.subr.mxu0 0.0
  %590 = vmatpush2.msra.mxu0 0.0
  %591 = vmatprep.subr.mxu0 0.0
  %592 = vmatpush2.msra.mxu0 0.0
  %593 = vmatprep.subr.mxu0 0.0
  %594 = vmatpush2.msra.mxu0 0.0
  %595 = vmatprep.mubr.f32.mxu0 0.0
  %596 = vmatmul.mubr.f32.gmra.mxu0 %v505
  %v597 = vpop.f32.mrf.mxu0
  %v598 = vadd.f32 0.0, %v597
  %v599 = vpop.f32.mrf.mxu0
  %600 = vmatprep.mubr.f32.mxu0 0.0
  %601 = vmatmul.mubr.f32.gmra.mxu0 %v508
  %v602 = vpop.f32.mrf.mxu0
  %v603 = vadd.f32 0.0, %v602
  %v604 = vpop.f32.mrf.mxu0
  %605 = vmatprep.mubr.f32.mxu0 0.0
  %606 = vmatmul.mubr.f32.gmra.mxu0 %v511
  %v607 = vpop.f32.mrf.mxu0
  %v608 = vadd.f32 0.0, %v607
  %v609 = vpop.f32.mrf.mxu0
  %610 = vmatprep.mubr.f32.mxu0 0.0
  %611 = vmatmul.mubr.f32.gmra.mxu0 %v514
  %v612 = vpop.f32.mrf.mxu0
  %v613 = vadd.f32 0.0, %v612
  %v614 = vpop.f32.mrf.mxu0
  %615 = vmatprep.mubr.f32.mxu0 0.0
  %616 = vmatmul.mubr.f32.gmra.mxu0 %v517
  %v617 = vpop.f32.mrf.mxu0
  %v618 = vadd.f32 0.0, %v617
  %v619 = vpop.f32.mrf.mxu0
  %620 = vmatprep.mubr.f32.mxu0 0.0
  %621 = vmatmul.mubr.f32.gmra.mxu0 %v520
  %v622 = vpop.f32.mrf.mxu0
  %v623 = vadd.f32 0.0, %v622
  %v624 = vpop.f32.mrf.mxu0
  %625 = vmatprep.mubr.f32.mxu0 0.0
  %626 = vmatmul.mubr.f32.gmra.mxu0 %v523
  %v627 = vpop.f32.mrf.mxu0
  %v628 = vadd.f32 0.0, %v627
  %v629 = vpop.f32.mrf.mxu0
  %630 = vmatprep.mubr.f32.mxu0 0.0
  %631 = vmatmul.mubr.f32.gmra.mxu0 %v526
  %v632 = vpop.f32.mrf.mxu0
  %v633 = vadd.f32 0.0, %v632
  %v634 = vpop.f32.mrf.mxu0
  %635 = vmatprep.mubr.f32.mxu0 0.0
  %636 = vmatmul.mubr.f32.gmra.mxu0 %v529
  %v637 = vpop.f32.mrf.mxu0
  %v638 = vadd.f32 0.0, %v637
  %v639 = vpop.f32.mrf.mxu0
  %640 = vdwg.mxu0
  %641 = vst.msk [vmem:[%s8] sm:$0xff] %vm153, %v598
  %642 = vst.msk [vmem:[%s8 + $0x8] sm:$0xff] %vm153, %v603
  %643 = vst.msk [vmem:[%s8 + $0x10] sm:$0xff] %vm153, %v608
  %644 = vst.msk [vmem:[%s8 + $0x18] sm:$0xff] %vm153, %v613
  %645 = vst.msk [vmem:[%s8 + $0x20] sm:$0xff] %vm153, %v618
  %646 = vst.msk [vmem:[%s8 + $0x28] sm:$0xff] %vm153, %v623
  %647 = vst.msk [vmem:[%s8 + $0x30] sm:$0xff] %vm153, %v628
  %648 = vst.msk [vmem:[%s8 + $0x38] sm:$0xff] %vm153, %v633
  %649 = vst.msk [vmem:[%s8 + $0x40] sm:$0xff] %vm153, %v638
  // Predicated region
  $region34: #{gpt_forward.5} parent=0 // pred_check
    _
  $region35: #{gpt_forward.5} parent=0 // pred_check_branch
    %651 = sbr.rel (0) target = $region37
  $region36: #{gpt_forward.5} parent=0 // pred_region
    _
  $region37: #{gpt_forward.5} parent=0 // pred_fallthru
    _
  // Predicated region
  $region38: #{gpt_forward.5} parent=0 // pred_check
    _
  $region39: #{gpt_forward.5} parent=0 // pred_check_branch
    %653 = sbr.rel (0) target = $region41
  $region40: #{gpt_forward.5} parent=0 // pred_region
    _
  $region41: #{gpt_forward.5} parent=0 // pred_fallthru
    _

</llo_original>
